<compile_context>
chip_gen: v7x
topology: tpu7x:2x2x1
jax: 0.10.0
libtpu: 0.0.40
codegen_flags: <defaults>
</compile_context>

<pallas_src>
import jax
import jax.numpy as jnp
from jax import lax
from jax.experimental import pallas as pl
from jax.experimental.pallas import tpu as pltpu


# ------------------------------ kernels ----------------------------------
def _log_alpha(lsig, wt):
    # clamp(log_sigma_sqr - 2*log(|wt| + 1e-8), min=-8, max=8)
    return jnp.clip(lsig - 2.0 * jnp.log(jnp.abs(wt) + 1e-8), -8.0, 8.0)


def vdl_eval_kernel(x_ref, wt_ref, lsig_ref, b_ref, o_ref):
    """Eval mode: y = x @ where(log_alpha > 3, 0, wt) + bias."""
    wt = wt_ref[...]                                   # (K, TN)
    log_alpha = _log_alpha(lsig_ref[...], wt)
    w_eff = jnp.where(log_alpha > 3.0, jnp.zeros_like(wt), wt)
    y = jnp.dot(x_ref[...], w_eff, preferred_element_type=jnp.float32)
    o_ref[...] = (y + b_ref[...]).astype(o_ref.dtype)


def vdl_train_kernel(x_ref, wt_ref, lsig_ref, b_ref, eps_ref, o_ref):
    """Training mode: mean + sqrt((x*x) @ (exp(log_alpha)*wt^2)) * eps."""
    x = x_ref[...]                                     # (TM, K)
    wt = wt_ref[...]                                   # (K, TN)
    log_alpha = _log_alpha(lsig_ref[...], wt)
    mean = jnp.dot(x, wt, preferred_element_type=jnp.float32) + b_ref[...]
    var_w = jnp.exp(log_alpha) * wt * wt
    var = jnp.dot(x * x, var_w, preferred_element_type=jnp.float32)
    o_ref[...] = (mean + jnp.sqrt(var) * eps_ref[...]).astype(o_ref.dtype)


# ------------------------------ wrapper ----------------------------------
def vdl_forward(x, weight, bias, log_sigma_sqr, *, training, eps=None,
                tm=128, tn=128):
    """weight is in PyTorch nn.Linear layout (out, in); glue transpose here."""
    x = x.astype(jnp.float32)
    wt = jnp.transpose(weight).astype(jnp.float32)      # (in, out)
    lsig = log_sigma_sqr.astype(jnp.float32)            # (in, out)
    b2 = bias.reshape(1, -1).astype(jnp.float32)        # (1, out)

    m, k = x.shape
    k2, n = wt.shape
    assert k == k2 and lsig.shape == (k, n) and b2.shape == (1, n)
    tm = min(tm, m)
    tn = min(tn, n)
    assert m % tm == 0 and n % tn == 0, "batch / out_size must divide the tile"
    grid = (m // tm, n // tn)

    x_spec = pl.BlockSpec((tm, k), lambda i, j: (i, 0))
    w_spec = pl.BlockSpec((k, tn), lambda i, j: (0, j))
    s_spec = pl.BlockSpec((k, tn), lambda i, j: (0, j))
    b_spec = pl.BlockSpec((1, tn), lambda i, j: (0, j))
    o_spec = pl.BlockSpec((tm, tn), lambda i, j: (i, j))

    if training:
        assert eps is not None and eps.shape == (m, n)
        kernel = vdl_train_kernel
        in_specs = [x_spec, w_spec, s_spec, b_spec,
                    pl.BlockSpec((tm, tn), lambda i, j: (i, j))]
        args = (x, wt, lsig, b2, eps.astype(jnp.float32))
    else:
        kernel = vdl_eval_kernel
        in_specs = [x_spec, w_spec, s_spec, b_spec]
        args = (x, wt, lsig, b2)

    return pl.pallas_call(
        kernel,
        out_shape=jax.ShapeDtypeStruct((m, n), jnp.float32),
        grid_spec=pltpu.PrefetchScalarGridSpec(
            num_scalar_prefetch=0,
            grid=grid,
            in_specs=in_specs,
            out_specs=o_spec,
        ),
        compiler_params=pltpu.CompilerParams(
            dimension_semantics=("parallel", "parallel")),
    )(*args)


eval_fn = jax.jit(lambda x, w, b, ls: vdl_forward(x, w, b, ls, training=False))
train_fn = jax.jit(lambda x, w, b, ls, e: vdl_forward(x, w, b, ls,
                                                      training=True, eps=e))


# ----------------------------- reference ---------------------------------
def reference(x, weight, bias, log_sigma_sqr, *, training, eps=None):
    wt = weight.T.astype(jnp.float32)
    log_alpha = jnp.clip(log_sigma_sqr - 2.0 * jnp.log(jnp.abs(wt) + 1e-8),
                         -8.0, 8.0)
    if training:
        mean = jnp.dot(x, wt, precision=lax.Precision.HIGHEST) + bias
        var = jnp.dot(x * x, jnp.exp(log_alpha) * wt * wt,
                      precision=lax.Precision.HIGHEST)
        return mean + jnp.sqrt(var) * eps
    w_eff = jnp.where(log_alpha > 3.0, jnp.zeros_like(wt), wt)
    return jnp.dot(x, w_eff, precision=lax.Precision.HIGHEST) + bias


# -------------------------------- main ------------------------------------
if __name__ == "__main__":
    key = jax.random.PRNGKey(0)
    k_x, k_w, k_b, k_s, k_e = jax.random.split(key, 5)

    M, IN, OUT = 256, 512, 256                      # batch, in_size, out_size
    x = jax.random.normal(k_x, (M, IN), jnp.float32)
    # PyTorch nn.Linear layout: weight is (out, in)
    weight = jax.random.normal(k_w, (OUT, IN), jnp.float32) / jnp.sqrt(IN)
    bias = 0.1 * jax.random.normal(k_b, (OUT,), jnp.float32)
    # module init fills log_sigma_sqr with -10.0; spread it so the clamp and
    # the log_alpha > 3 mask branches are actually exercised by the test
    log_sigma_sqr = -10.0 + 2.0 * jax.random.normal(k_s, (IN, OUT), jnp.float32)
    eps = jax.random.normal(k_e, (M, OUT), jnp.float32)   # the torch.normal draw

    y_eval = jax.block_until_ready(eval_fn(x, weight, bias, log_sigma_sqr))
    y_train = jax.block_until_ready(train_fn(x, weight, bias, log_sigma_sqr, eps))

    ref_eval = reference(x, weight, bias, log_sigma_sqr, training=False)
    ref_train = reference(x, weight, bias, log_sigma_sqr, training=True, eps=eps)

    err_e = float(jnp.max(jnp.abs(y_eval - ref_eval)))
    err_t = float(jnp.max(jnp.abs(y_train - ref_train)))
    assert y_eval.shape == (M, OUT), y_eval.shape
    assert y_train.shape == (M, OUT), y_train.shape
    assert err_e < 5e-4, f"eval max abs error too large: {err_e}"
    assert err_t < 5e-4, f"train max abs error too large: {err_t}"
    print("KERNEL_OK")
</pallas_src>

<mosaic_0001>
module attributes {stable_mosaic.version = 11 : i64} {
  func.func @vdl_eval_kernel(%arg0: i32, %arg1: i32, %arg2: memref<128x512xf32, #tpu.memory_space<vmem>>, %arg3: memref<512x128xf32, #tpu.memory_space<vmem>>, %arg4: memref<512x128xf32, #tpu.memory_space<vmem>>, %arg5: memref<1x128xf32, #tpu.memory_space<vmem>>, %arg6: memref<128x128xf32, #tpu.memory_space<vmem>>) attributes {dimension_semantics = [#tpu.dimension_semantics<parallel>, #tpu.dimension_semantics<parallel>], iteration_bounds = array<i64: 2, 2>, scalar_prefetch = 0 : i64, scratch_operands = 0 : i64, tpu.core_type = #tpu.core_type<tc>, window_params = [{transform_indices = @transform_0, window_bounds = array<i64: 128, 512>}, {transform_indices = @transform_1, window_bounds = array<i64: 512, 128>}, {transform_indices = @transform_2, window_bounds = array<i64: 512, 128>}, {transform_indices = @transform_3, window_bounds = array<i64: 1, 128>}, {transform_indices = @transform_4, window_bounds = array<i64: 128, 128>}]} {
    %c0 = arith.constant 0 : index
    %c0_0 = arith.constant 0 : index
    %0 = vector.load %arg3[%c0, %c0_0] : memref<512x128xf32, #tpu.memory_space<vmem>>, vector<512x128xf32>
    %c0_1 = arith.constant 0 : index
    %c0_2 = arith.constant 0 : index
    %1 = vector.load %arg4[%c0_1, %c0_2] : memref<512x128xf32, #tpu.memory_space<vmem>>, vector<512x128xf32>
    %2 = math.absf %0 : vector<512x128xf32>
    %cst = arith.constant 9.99999993E-9 : f32
    %3 = vector.broadcast %cst : f32 to vector<512x128xf32>
    %4 = arith.addf %2, %3 : vector<512x128xf32>
    %5 = math.log %4 : vector<512x128xf32>
    %cst_3 = arith.constant 2.000000e+00 : f32
    %6 = vector.broadcast %cst_3 : f32 to vector<512x128xf32>
    %7 = arith.mulf %6, %5 : vector<512x128xf32>
    %8 = arith.subf %1, %7 : vector<512x128xf32>
    %cst_4 = arith.constant -8.000000e+00 : f32
    %cst_5 = arith.constant 8.000000e+00 : f32
    %9 = vector.broadcast %cst_4 : f32 to vector<512x128xf32>
    %10 = arith.maximumf %9, %8 : vector<512x128xf32>
    %11 = vector.broadcast %cst_5 : f32 to vector<512x128xf32>
    %12 = arith.minimumf %11, %10 : vector<512x128xf32>
    %cst_6 = arith.constant 3.000000e+00 : f32
    %13 = vector.broadcast %cst_6 : f32 to vector<512x128xf32>
    %14 = arith.cmpf ogt, %12, %13 : vector<512x128xf32>
    %cst_7 = arith.constant 0.000000e+00 : f32
    %15 = vector.broadcast %cst_7 : f32 to vector<512x128xf32>
    %16 = arith.select %14, %15, %0 : vector<512x128xi1>, vector<512x128xf32>
    %c0_8 = arith.constant 0 : index
    %c0_9 = arith.constant 0 : index
    %17 = vector.load %arg2[%c0_8, %c0_9] : memref<128x512xf32, #tpu.memory_space<vmem>>, vector<128x512xf32>
    %cst_10 = arith.constant dense<0.000000e+00> : vector<128x128xf32>
    %18 = tpu.matmul %17, %16, %cst_10 {dimension_numbers = #tpu.dot_dimension_numbers<[1], [0], [0], [1], [0, 0, 1, 1], [], []>} : vector<128x512xf32>, vector<512x128xf32>, vector<128x128xf32> -> vector<128x128xf32>
    %c0_11 = arith.constant 0 : index
    %c0_12 = arith.constant 0 : index
    %19 = vector.load %arg5[%c0_11, %c0_12] : memref<1x128xf32, #tpu.memory_space<vmem>>, vector<1x128xf32>
    %20 = vector.broadcast %19 : vector<1x128xf32> to vector<128x128xf32>
    %21 = arith.addf %18, %20 : vector<128x128xf32>
    %c0_13 = arith.constant 0 : index
    %c0_14 = arith.constant 0 : index
    %22 = vector.load %arg6[%c0_13, %c0_14] : memref<128x128xf32, #tpu.memory_space<vmem>>, vector<128x128xf32>
    tpu.vector_store %arg6[%c0_13, %c0_14], %21 {strides = array<i32>} : memref<128x128xf32, #tpu.memory_space<vmem>>, vector<128x128xf32>,
    return
  }
  func.func @transform_0(%arg0: i32, %arg1: i32) -> (i32, i32) {
    %c0_i32 = arith.constant 0 : i32
    %c0_i32_0 = arith.constant 0 : i32
    return %arg0, %c0_i32 : i32, i32
  }
  func.func @transform_1(%arg0: i32, %arg1: i32) -> (i32, i32) {
    %c0_i32 = arith.constant 0 : i32
    %c0_i32_0 = arith.constant 0 : i32
    return %c0_i32, %arg1 : i32, i32
  }
  func.func @transform_2(%arg0: i32, %arg1: i32) -> (i32, i32) {
    %c0_i32 = arith.constant 0 : i32
    %c0_i32_0 = arith.constant 0 : i32
    return %c0_i32, %arg1 : i32, i32
  }
  func.func @transform_3(%arg0: i32, %arg1: i32) -> (i32, i32) {
    %c0_i32 = arith.constant 0 : i32
    %c0_i32_0 = arith.constant 0 : i32
    return %c0_i32, %arg1 : i32, i32
  }
  func.func @transform_4(%arg0: i32, %arg1: i32) -> (i32, i32) {
    %c0_i32 = arith.constant 0 : i32
    return %arg0, %arg1 : i32, i32
  }
}

</mosaic_0001>

<llo_original>
// kernel: _lambda_.1
$region0: #{_lambda_.1}
  #allocation0 [shape = 'u32[]', space=smem, size = 0x4, offset = 0x4, fixed_abs, tag = 'smem constant byte address 0x4 - core index']
  #allocation1 [shape = 'u32[144,128]{1,0:T(1,128)}', space=vmem, size = 0x12000, scoped, tag = 'internal scratch']
  %s0 = inlined_call_operand.vmem [shape: f32[256,512], index: 0, kind: input, shape index: {}]
  %s1 = inlined_call_operand.vmem [shape: f32[512,256], index: 1, kind: input, shape index: {}]
  %s2 = inlined_call_operand.vmem [shape: f32[512,256], index: 2, kind: input, shape index: {}]
  %s3 = inlined_call_operand.vmem [shape: f32[1,256], index: 3, kind: input, shape index: {}]
  %s4 = inlined_call_operand.hbm [shape: f32[256,256], index: 4, kind: output, shape index: {}]
  %s5 = sld [smem:[#allocation0]]
  $region125: #{_lambda_.1} parent=0
    _
  %s7 = ssub.s32 1, %s5
  %s8 = scalar_select 0, %s7, %s5
  $region1: #{_lambda_.1} parent=0
    #allocation2 [shape = 'u8[524288]{0}', space=vmem, size = 0x80000, scoped, tag = 'input window, operand 1']
    #allocation3 [shape = 'u8[524288]{0}', space=vmem, size = 0x80000, scoped, tag = 'input window, operand 2']
    #allocation4 [shape = 'u8[131072]{0}', space=vmem, size = 0x20000, scoped, tag = 'output window, operand 0']
    #allocation5 [shape = 's32[2]{0}', space=sflag, size = 0x8, scoped, tag = 'scoped memory for _lambda_.1']
    %9 = vsyncpa [#allocation5], 0
    %s10 = scalar_lea.sflag [#allocation5], 1
    %11 = vsyncpa %s10, 0
    loop: start=0, step=1, limit=6
    $region2: #{_lambda_.1} parent=1 // loop_pre_header
      _
    $region3: #{_lambda_.1} parent=1 // loop_header
      %s13 = sphi 0, %s17
      %p14 = scmp.ge.s32.totalorder %s13, 6
      %s20 = sphi 0, %s32
      %s21 = sphi 0, %s28
      %s22 = sphi 0, %s20
      %s23 = sphi 0, %s21
      %s24 = sphi 0, %s22
      %s25 = sphi 0, %s23
      %s35 = sphi 0, %s37
      %s38 = sphi 0, %s35
      %s39 = sphi 0, %s38
      %s55 = sphi 0, %s39
      %s61 = sphi 0, %s63
      %s64 = sphi 0, %s61
      %s65 = sphi 0, %s64
      %s81 = sphi 0, %s65
      %s87 = sphi 0, %s89
      %s90 = sphi 0, %s87
      %s91 = sphi 0, %s90
      %s107 = sphi 0, %s91
      %s113 = sphi 0, %s115
      %s116 = sphi 0, %s113
      %s117 = sphi 0, %s116
      %s133 = sphi 0, %s117
      %s141 = sphi 0, %s143
      %s144 = sphi 0, %s141
      %s145 = sphi 0, %s144
      %s161 = sphi 0, %s145
    $region4: #{_lambda_.1} parent=1 // loop_header_branch
      %16 = sbr.rel (%p14) target = $region8
    $region5: #{_lambda_.1} parent=1 // loop_body
      %s18 = ssub.s32 %s13, 1
      %s19 = ssub.s32 %s13, 2
      %s26 = sadd.s32 1, %s21
      %p27 = scmp.ge.s32.totalorder %s26, 2
      %s28 = scalar_select %p27, 0, %s26
      %s29 = sadd.s32 1, %s20
      %s30 = scalar_select %p27, %s29, %s20
      %p31 = scmp.ge.s32.totalorder %s30, 2
      %s32 = scalar_select %p31, 0, %s30
      %s33 = ssub.s32 %s20, %s32
      %p34 = scmp.eq.s32.totalorder %s33, 0
      %s36 = sadd.s32 %s35, 1
      %s37 = scalar_select %p34, %s35, %s36
      %p40 = pneg %p34
      %p41 = scmp.eq.s32.totalorder %s13, 3
      %p42 = por %p40, %p41
      %p43 = scmp.ne.s32.totalorder %s35, %s38
      %p44 = scmp.eq.s32.totalorder %s13, 0
      %p45 = por %p43, %p44
      %p46 = scmp.ne.s32.totalorder %s35, %s38
      %p47 = scmp.eq.s32.totalorder %s18, 3
      %p48 = por %p46, %p47
      %p49 = scmp.ne.s32.totalorder %s38, %s39
      %p50 = scmp.eq.s32.totalorder %s18, 0
      %p51 = por %p49, %p50
      %p52 = scmp.ne.s32.totalorder %s38, %s39
      %p53 = scmp.eq.s32.totalorder %s19, 3
      %p54 = por %p52, %p53
      %p56 = scmp.ne.s32.totalorder %s39, %s55
      %p57 = scmp.eq.s32.totalorder %s19, 0
      %p58 = por %p56, %p57
      %s59 = ssub.s32 %s21, %s28
      %p60 = scmp.eq.s32.totalorder %s59, 0
      %s62 = sadd.s32 %s61, 1
      %s63 = scalar_select %p60, %s61, %s62
      %p66 = pneg %p60
      %p67 = scmp.eq.s32.totalorder %s13, 3
      %p68 = por %p66, %p67
      %p69 = scmp.ne.s32.totalorder %s61, %s64
      %p70 = scmp.eq.s32.totalorder %s13, 0
      %p71 = por %p69, %p70
      %p72 = scmp.ne.s32.totalorder %s61, %s64
      %p73 = scmp.eq.s32.totalorder %s18, 3
      %p74 = por %p72, %p73
      %p75 = scmp.ne.s32.totalorder %s64, %s65
      %p76 = scmp.eq.s32.totalorder %s18, 0
      %p77 = por %p75, %p76
      %p78 = scmp.ne.s32.totalorder %s64, %s65
      %p79 = scmp.eq.s32.totalorder %s19, 3
      %p80 = por %p78, %p79
      %p82 = scmp.ne.s32.totalorder %s65, %s81
      %p83 = scmp.eq.s32.totalorder %s19, 0
      %p84 = por %p82, %p83
      %s85 = ssub.s32 %s21, %s28
      %p86 = scmp.eq.s32.totalorder %s85, 0
      %s88 = sadd.s32 %s87, 1
      %s89 = scalar_select %p86, %s87, %s88
      %p92 = pneg %p86
      %p93 = scmp.eq.s32.totalorder %s13, 3
      %p94 = por %p92, %p93
      %p95 = scmp.ne.s32.totalorder %s87, %s90
      %p96 = scmp.eq.s32.totalorder %s13, 0
      %p97 = por %p95, %p96
      %p98 = scmp.ne.s32.totalorder %s87, %s90
      %p99 = scmp.eq.s32.totalorder %s18, 3
      %p100 = por %p98, %p99
      %p101 = scmp.ne.s32.totalorder %s90, %s91
      %p102 = scmp.eq.s32.totalorder %s18, 0
      %p103 = por %p101, %p102
      %p104 = scmp.ne.s32.totalorder %s90, %s91
      %p105 = scmp.eq.s32.totalorder %s19, 3
      %p106 = por %p104, %p105
      %p108 = scmp.ne.s32.totalorder %s91, %s107
      %p109 = scmp.eq.s32.totalorder %s19, 0
      %p110 = por %p108, %p109
      %s111 = ssub.s32 %s21, %s28
      %p112 = scmp.eq.s32.totalorder %s111, 0
      %s114 = sadd.s32 %s113, 1
      %s115 = scalar_select %p112, %s113, %s114
      %p118 = pneg %p112
      %p119 = scmp.eq.s32.totalorder %s13, 3
      %p120 = por %p118, %p119
      %p121 = scmp.ne.s32.totalorder %s113, %s116
      %p122 = scmp.eq.s32.totalorder %s13, 0
      %p123 = por %p121, %p122
      %p124 = scmp.ne.s32.totalorder %s113, %s116
      %p125 = scmp.eq.s32.totalorder %s18, 3
      %p126 = por %p124, %p125
      %p127 = scmp.ne.s32.totalorder %s116, %s117
      %p128 = scmp.eq.s32.totalorder %s18, 0
      %p129 = por %p127, %p128
      %p130 = scmp.ne.s32.totalorder %s116, %s117
      %p131 = scmp.eq.s32.totalorder %s19, 3
      %p132 = por %p130, %p131
      %p134 = scmp.ne.s32.totalorder %s117, %s133
      %p135 = scmp.eq.s32.totalorder %s19, 0
      %p136 = por %p134, %p135
      %s137 = ssub.s32 %s20, %s32
      %s138 = ssub.s32 %s21, %s28
      %s139 = sor.u32 %s137, %s138
      %p140 = scmp.eq.s32.totalorder %s139, 0
      %s142 = sadd.s32 %s141, 1
      %s143 = scalar_select %p140, %s141, %s142
      %p146 = pneg %p140
      %p147 = scmp.eq.s32.totalorder %s13, 3
      %p148 = por %p146, %p147
      %p149 = scmp.ne.s32.totalorder %s141, %s144
      %p150 = scmp.eq.s32.totalorder %s13, 0
      %p151 = por %p149, %p150
      %p152 = scmp.ne.s32.totalorder %s141, %s144
      %p153 = scmp.eq.s32.totalorder %s18, 3
      %p154 = por %p152, %p153
      %p155 = scmp.ne.s32.totalorder %s144, %s145
      %p156 = scmp.eq.s32.totalorder %s18, 0
      %p157 = por %p155, %p156
      %p158 = scmp.ne.s32.totalorder %s144, %s145
      %p159 = scmp.eq.s32.totalorder %s19, 3
      %p160 = por %p158, %p159
      %p162 = scmp.ne.s32.totalorder %s145, %s161
      %p163 = scmp.eq.s32.totalorder %s19, 0
      %p164 = por %p162, %p163
      %p165 = scmp.le.s32.totalorder 1, %s13
      %p166 = scmp.lt.s32.totalorder %s13, 5
      %p167 = pnand %p165, %p166
      %p168 = pneg %p167
      // Predicated region
      $region9: #{_lambda_.1} parent=5 // pred_check
        _
      $region10: #{_lambda_.1} parent=5 // pred_check_branch
        %170 = sbr.rel (%p167) target = $region12
      $region11: #{_lambda_.1} parent=5 // pred_region
        %s171 = ssub.s32 %s13, 1
      $region12: #{_lambda_.1} parent=5 // pred_fallthru
        _
      %p172 = scmp.lt.s32.totalorder %s13, 4
      // Predicated region
      $region13: #{_lambda_.1} parent=5 // pred_check
        %p173 = pneg %p172
      $region14: #{_lambda_.1} parent=5 // pred_check_branch
        %175 = sbr.rel (%p173) target = $region16
      $region15: #{_lambda_.1} parent=5 // pred_region
        // Predicated region
        $region17: #{_lambda_.1} parent=15 // pred_check
          %p176 = pneg %p45
        $region18: #{_lambda_.1} parent=15 // pred_check_branch
          %178 = sbr.rel (%p176) target = $region20
        $region19: #{_lambda_.1} parent=15 // pred_region
          %s179 = smul.u32 16, %s20
          %p180 = scmp.lt.s32.totalorder %s179, 31
          %s181 = scalar_select %p180, %s179, 31
          %s182 = smul.addr %s181, 4
          %s183 = smul.addr %s182, 8
          %s184 = scalar_lea.vmem %s0, %s183
          %s185 = smul.u32 16, %s20
        $region20: #{_lambda_.1} parent=15 // pred_fallthru
          _
        // Predicated region
        $region21: #{_lambda_.1} parent=15 // pred_check
          %p186 = pneg %p71
        $region22: #{_lambda_.1} parent=15 // pred_check_branch
          %188 = sbr.rel (%p186) target = $region24
        $region23: #{_lambda_.1} parent=15 // pred_region
          %s189 = sand.u32 %s61, 1
          %s190 = sand.u32 %s61, 1
          %s191 = smul.addr %s190, 512
          %s192 = scalar_lea.vmem [#allocation2], %s191
          %s193 = smul.addr %s21, 8
          %s194 = scalar_lea.vmem %s1, %s193
          // Predicated region
          $region25: #{_lambda_.1} parent=23 // pred_check
            _
          $region26: #{_lambda_.1} parent=23 // pred_check_branch
            %196 = sbr.rel (0) target = $region28
          $region27: #{_lambda_.1} parent=23 // pred_region
            // Predicated region
            $region29: #{_lambda_.1} parent=27 // pred_check
              _
            $region30: #{_lambda_.1} parent=27 // pred_check_branch
              %198 = sbr.rel (0) target = $region32
            $region31: #{_lambda_.1} parent=27 // pred_region
              // Predicated region
              $region44: #{_lambda_.1} parent=31 // pred_check
                _
              $region45: #{_lambda_.1} parent=31 // pred_check_branch
                %339 = sbr.rel (0) target = $region47
              $region46: #{_lambda_.1} parent=31 // pred_region
                loop: start=0, step=1, limit=1
                $region48: #{_lambda_.1} parent=46 // loop_pre_header
                  _
                $region49: #{_lambda_.1} parent=46 // loop_header
                  %s341 = sphi 0, %s345
                  %p342 = scmp.ge.s32.totalorder %s341, 1
                  %s346 = sphi %s194, %s194
                  %s347 = sphi %s192, %s192
                $region50: #{_lambda_.1} parent=46 // loop_header_branch
                  %344 = sbr.rel (%p342) target = $region54
                $region51: #{_lambda_.1} parent=46 // loop_body
                  %v348 = vld [vmem:[%s346] sm:$0xff]
                  %349 = vst [vmem:[%s347] sm:$0xff] %v348
                  %v350 = vld [vmem:[%s346 + $0x10] sm:$0xff]
                  %351 = vst [vmem:[%s347 + $0x8] sm:$0xff] %v350
                  %v352 = vld [vmem:[%s346 + $0x20] sm:$0xff]
                  %353 = vst [vmem:[%s347 + $0x10] sm:$0xff] %v352
                  %v354 = vld [vmem:[%s346 + $0x30] sm:$0xff]
                  %355 = vst [vmem:[%s347 + $0x18] sm:$0xff] %v354
                  %v356 = vld [vmem:[%s346 + $0x40] sm:$0xff]
                  %357 = vst [vmem:[%s347 + $0x20] sm:$0xff] %v356
                  %v358 = vld [vmem:[%s346 + $0x50] sm:$0xff]
                  %359 = vst [vmem:[%s347 + $0x28] sm:$0xff] %v358
                  %v360 = vld [vmem:[%s346 + $0x60] sm:$0xff]
                  %361 = vst [vmem:[%s347 + $0x30] sm:$0xff] %v360
                  %v362 = vld [vmem:[%s346 + $0x70] sm:$0xff]
                  %363 = vst [vmem:[%s347 + $0x38] sm:$0xff] %v362
                  %v364 = vld [vmem:[%s346 + $0x80] sm:$0xff]
                  %365 = vst [vmem:[%s347 + $0x40] sm:$0xff] %v364
                  %v366 = vld [vmem:[%s346 + $0x90] sm:$0xff]
                  %367 = vst [vmem:[%s347 + $0x48] sm:$0xff] %v366
                  %v368 = vld [vmem:[%s346 + $0xa0] sm:$0xff]
                  %369 = vst [vmem:[%s347 + $0x50] sm:$0xff] %v368
                  %v370 = vld [vmem:[%s346 + $0xb0] sm:$0xff]
                  %371 = vst [vmem:[%s347 + $0x58] sm:$0xff] %v370
                  %v372 = vld [vmem:[%s346 + $0xc0] sm:$0xff]
                  %373 = vst [vmem:[%s347 + $0x60] sm:$0xff] %v372
                  %v374 = vld [vmem:[%s346 + $0xd0] sm:$0xff]
                  %375 = vst [vmem:[%s347 + $0x68] sm:$0xff] %v374
                  %v376 = vld [vmem:[%s346 + $0xe0] sm:$0xff]
                  %377 = vst [vmem:[%s347 + $0x70] sm:$0xff] %v376
                  %v378 = vld [vmem:[%s346 + $0xf0] sm:$0xff]
                  %379 = vst [vmem:[%s347 + $0x78] sm:$0xff] %v378
                  %v380 = vld [vmem:[%s346 + $0x100] sm:$0xff]
                  %381 = vst [vmem:[%s347 + $0x80] sm:$0xff] %v380
                  %v382 = vld [vmem:[%s346 + $0x110] sm:$0xff]
                  %383 = vst [vmem:[%s347 + $0x88] sm:$0xff] %v382
                  %v384 = vld [vmem:[%s346 + $0x120] sm:$0xff]
                  %385 = vst [vmem:[%s347 + $0x90] sm:$0xff] %v384
                  %v386 = vld [vmem:[%s346 + $0x130] sm:$0xff]
                  %387 = vst [vmem:[%s347 + $0x98] sm:$0xff] %v386
                  %v388 = vld [vmem:[%s346 + $0x140] sm:$0xff]
                  %389 = vst [vmem:[%s347 + $0xa0] sm:$0xff] %v388
                  %v390 = vld [vmem:[%s346 + $0x150] sm:$0xff]
                  %391 = vst [vmem:[%s347 + $0xa8] sm:$0xff] %v390
                  %v392 = vld [vmem:[%s346 + $0x160] sm:$0xff]
                  %393 = vst [vmem:[%s347 + $0xb0] sm:$0xff] %v392
                  %v394 = vld [vmem:[%s346 + $0x170] sm:$0xff]
                  %395 = vst [vmem:[%s347 + $0xb8] sm:$0xff] %v394
                  %v396 = vld [vmem:[%s346 + $0x180] sm:$0xff]
                  %397 = vst [vmem:[%s347 + $0xc0] sm:$0xff] %v396
                  %v398 = vld [vmem:[%s346 + $0x190] sm:$0xff]
                  %399 = vst [vmem:[%s347 + $0xc8] sm:$0xff] %v398
                  %v400 = vld [vmem:[%s346 + $0x1a0] sm:$0xff]
                  %401 = vst [vmem:[%s347 + $0xd0] sm:$0xff] %v400
                  %v402 = vld [vmem:[%s346 + $0x1b0] sm:$0xff]
                  %403 = vst [vmem:[%s347 + $0xd8] sm:$0xff] %v402
                  %v404 = vld [vmem:[%s346 + $0x1c0] sm:$0xff]
                  %405 = vst [vmem:[%s347 + $0xe0] sm:$0xff] %v404
                  %v406 = vld [vmem:[%s346 + $0x1d0] sm:$0xff]
                  %407 = vst [vmem:[%s347 + $0xe8] sm:$0xff] %v406
                  %v408 = vld [vmem:[%s346 + $0x1e0] sm:$0xff]
                  %409 = vst [vmem:[%s347 + $0xf0] sm:$0xff] %v408
                  %v410 = vld [vmem:[%s346 + $0x1f0] sm:$0xff]
                  %411 = vst [vmem:[%s347 + $0xf8] sm:$0xff] %v410
                  %v412 = vld [vmem:[%s346 + $0x200] sm:$0xff]
                  %413 = vst [vmem:[%s347 + $0x100] sm:$0xff] %v412
                  %v414 = vld [vmem:[%s346 + $0x210] sm:$0xff]
                  %415 = vst [vmem:[%s347 + $0x108] sm:$0xff] %v414
                  %v416 = vld [vmem:[%s346 + $0x220] sm:$0xff]
                  %417 = vst [vmem:[%s347 + $0x110] sm:$0xff] %v416
                  %v418 = vld [vmem:[%s346 + $0x230] sm:$0xff]
                  %419 = vst [vmem:[%s347 + $0x118] sm:$0xff] %v418
                  %v420 = vld [vmem:[%s346 + $0x240] sm:$0xff]
                  %421 = vst [vmem:[%s347 + $0x120] sm:$0xff] %v420
                  %v422 = vld [vmem:[%s346 + $0x250] sm:$0xff]
                  %423 = vst [vmem:[%s347 + $0x128] sm:$0xff] %v422
                  %v424 = vld [vmem:[%s346 + $0x260] sm:$0xff]
                  %425 = vst [vmem:[%s347 + $0x130] sm:$0xff] %v424
                  %v426 = vld [vmem:[%s346 + $0x270] sm:$0xff]
                  %427 = vst [vmem:[%s347 + $0x138] sm:$0xff] %v426
                  %v428 = vld [vmem:[%s346 + $0x280] sm:$0xff]
                  %429 = vst [vmem:[%s347 + $0x140] sm:$0xff] %v428
                  %v430 = vld [vmem:[%s346 + $0x290] sm:$0xff]
                  %431 = vst [vmem:[%s347 + $0x148] sm:$0xff] %v430
                  %v432 = vld [vmem:[%s346 + $0x2a0] sm:$0xff]
                  %433 = vst [vmem:[%s347 + $0x150] sm:$0xff] %v432
                  %v434 = vld [vmem:[%s346 + $0x2b0] sm:$0xff]
                  %435 = vst [vmem:[%s347 + $0x158] sm:$0xff] %v434
                  %v436 = vld [vmem:[%s346 + $0x2c0] sm:$0xff]
                  %437 = vst [vmem:[%s347 + $0x160] sm:$0xff] %v436
                  %v438 = vld [vmem:[%s346 + $0x2d0] sm:$0xff]
                  %439 = vst [vmem:[%s347 + $0x168] sm:$0xff] %v438
                  %v440 = vld [vmem:[%s346 + $0x2e0] sm:$0xff]
                  %441 = vst [vmem:[%s347 + $0x170] sm:$0xff] %v440
                  %v442 = vld [vmem:[%s346 + $0x2f0] sm:$0xff]
                  %443 = vst [vmem:[%s347 + $0x178] sm:$0xff] %v442
                  %v444 = vld [vmem:[%s346 + $0x300] sm:$0xff]
                  %445 = vst [vmem:[%s347 + $0x180] sm:$0xff] %v444
                  %v446 = vld [vmem:[%s346 + $0x310] sm:$0xff]
                  %447 = vst [vmem:[%s347 + $0x188] sm:$0xff] %v446
                  %v448 = vld [vmem:[%s346 + $0x320] sm:$0xff]
                  %449 = vst [vmem:[%s347 + $0x190] sm:$0xff] %v448
                  %v450 = vld [vmem:[%s346 + $0x330] sm:$0xff]
                  %451 = vst [vmem:[%s347 + $0x198] sm:$0xff] %v450
                  %v452 = vld [vmem:[%s346 + $0x340] sm:$0xff]
                  %453 = vst [vmem:[%s347 + $0x1a0] sm:$0xff] %v452
                  %v454 = vld [vmem:[%s346 + $0x350] sm:$0xff]
                  %455 = vst [vmem:[%s347 + $0x1a8] sm:$0xff] %v454
                  %v456 = vld [vmem:[%s346 + $0x360] sm:$0xff]
                  %457 = vst [vmem:[%s347 + $0x1b0] sm:$0xff] %v456
                  %v458 = vld [vmem:[%s346 + $0x370] sm:$0xff]
                  %459 = vst [vmem:[%s347 + $0x1b8] sm:$0xff] %v458
                  %v460 = vld [vmem:[%s346 + $0x380] sm:$0xff]
                  %461 = vst [vmem:[%s347 + $0x1c0] sm:$0xff] %v460
                  %v462 = vld [vmem:[%s346 + $0x390] sm:$0xff]
                  %463 = vst [vmem:[%s347 + $0x1c8] sm:$0xff] %v462
                  %v464 = vld [vmem:[%s346 + $0x3a0] sm:$0xff]
                  %465 = vst [vmem:[%s347 + $0x1d0] sm:$0xff] %v464
                  %v466 = vld [vmem:[%s346 + $0x3b0] sm:$0xff]
                  %467 = vst [vmem:[%s347 + $0x1d8] sm:$0xff] %v466
                  %v468 = vld [vmem:[%s346 + $0x3c0] sm:$0xff]
                  %469 = vst [vmem:[%s347 + $0x1e0] sm:$0xff] %v468
                  %v470 = vld [vmem:[%s346 + $0x3d0] sm:$0xff]
                  %471 = vst [vmem:[%s347 + $0x1e8] sm:$0xff] %v470
                  %v472 = vld [vmem:[%s346 + $0x3e0] sm:$0xff]
                  %473 = vst [vmem:[%s347 + $0x1f0] sm:$0xff] %v472
                  %v474 = vld [vmem:[%s346 + $0x3f0] sm:$0xff]
                  %475 = vst [vmem:[%s347 + $0x1f8] sm:$0xff] %v474
                $region52: #{_lambda_.1} parent=46 // loop_footer
                  %s345 = sadd.s32 1, %s341
                $region53: #{_lambda_.1} parent=46 // loop_footer_branch
                  %340 = sbr.rel target = $region49
                $region54: #{_lambda_.1} parent=46 // loop_exit
                  _
              $region47: #{_lambda_.1} parent=31 // pred_fallthru
                _
              // Predicated region
              $region55: #{_lambda_.1} parent=31 // pred_check
                _
              $region56: #{_lambda_.1} parent=31 // pred_check_branch
                %477 = sbr.rel target = $region58
              $region57: #{_lambda_.1} parent=31 // pred_region
                _
              $region58: #{_lambda_.1} parent=31 // pred_fallthru
                _
            $region32: #{_lambda_.1} parent=27 // pred_fallthru
              _
            // Predicated region
            $region33: #{_lambda_.1} parent=27 // pred_check
              _
            $region34: #{_lambda_.1} parent=27 // pred_check_branch
              %200 = sbr.rel target = $region36
            $region35: #{_lambda_.1} parent=27 // pred_region
              loop: start=0, step=1, limit=1
              $region37: #{_lambda_.1} parent=35 // loop_pre_header
                _
              $region38: #{_lambda_.1} parent=35 // loop_header
                %s203 = sphi 0, %s207
                %p204 = scmp.ge.s32.totalorder %s203, 1
                %s208 = sphi %s194, %s194
                %s209 = sphi %s192, %s192
              $region39: #{_lambda_.1} parent=35 // loop_header_branch
                %206 = sbr.rel (%p204) target = $region43
              $region40: #{_lambda_.1} parent=35 // loop_body
                %v210 = vld [vmem:[%s208] sm:$0xff]
                %211 = vst [vmem:[%s209] sm:$0xff] %v210
                %v212 = vld [vmem:[%s208 + $0x10] sm:$0xff]
                %213 = vst [vmem:[%s209 + $0x8] sm:$0xff] %v212
                %v214 = vld [vmem:[%s208 + $0x20] sm:$0xff]
                %215 = vst [vmem:[%s209 + $0x10] sm:$0xff] %v214
                %v216 = vld [vmem:[%s208 + $0x30] sm:$0xff]
                %217 = vst [vmem:[%s209 + $0x18] sm:$0xff] %v216
                %v218 = vld [vmem:[%s208 + $0x40] sm:$0xff]
                %219 = vst [vmem:[%s209 + $0x20] sm:$0xff] %v218
                %v220 = vld [vmem:[%s208 + $0x50] sm:$0xff]
                %221 = vst [vmem:[%s209 + $0x28] sm:$0xff] %v220
                %v222 = vld [vmem:[%s208 + $0x60] sm:$0xff]
                %223 = vst [vmem:[%s209 + $0x30] sm:$0xff] %v222
                %v224 = vld [vmem:[%s208 + $0x70] sm:$0xff]
                %225 = vst [vmem:[%s209 + $0x38] sm:$0xff] %v224
                %v226 = vld [vmem:[%s208 + $0x80] sm:$0xff]
                %227 = vst [vmem:[%s209 + $0x40] sm:$0xff] %v226
                %v228 = vld [vmem:[%s208 + $0x90] sm:$0xff]
                %229 = vst [vmem:[%s209 + $0x48] sm:$0xff] %v228
                %v230 = vld [vmem:[%s208 + $0xa0] sm:$0xff]
                %231 = vst [vmem:[%s209 + $0x50] sm:$0xff] %v230
                %v232 = vld [vmem:[%s208 + $0xb0] sm:$0xff]
                %233 = vst [vmem:[%s209 + $0x58] sm:$0xff] %v232
                %v234 = vld [vmem:[%s208 + $0xc0] sm:$0xff]
                %235 = vst [vmem:[%s209 + $0x60] sm:$0xff] %v234
                %v236 = vld [vmem:[%s208 + $0xd0] sm:$0xff]
                %237 = vst [vmem:[%s209 + $0x68] sm:$0xff] %v236
                %v238 = vld [vmem:[%s208 + $0xe0] sm:$0xff]
                %239 = vst [vmem:[%s209 + $0x70] sm:$0xff] %v238
                %v240 = vld [vmem:[%s208 + $0xf0] sm:$0xff]
                %241 = vst [vmem:[%s209 + $0x78] sm:$0xff] %v240
                %v242 = vld [vmem:[%s208 + $0x100] sm:$0xff]
                %243 = vst [vmem:[%s209 + $0x80] sm:$0xff] %v242
                %v244 = vld [vmem:[%s208 + $0x110] sm:$0xff]
                %245 = vst [vmem:[%s209 + $0x88] sm:$0xff] %v244
                %v246 = vld [vmem:[%s208 + $0x120] sm:$0xff]
                %247 = vst [vmem:[%s209 + $0x90] sm:$0xff] %v246
                %v248 = vld [vmem:[%s208 + $0x130] sm:$0xff]
                %249 = vst [vmem:[%s209 + $0x98] sm:$0xff] %v248
                %v250 = vld [vmem:[%s208 + $0x140] sm:$0xff]
                %251 = vst [vmem:[%s209 + $0xa0] sm:$0xff] %v250
                %v252 = vld [vmem:[%s208 + $0x150] sm:$0xff]
                %253 = vst [vmem:[%s209 + $0xa8] sm:$0xff] %v252
                %v254 = vld [vmem:[%s208 + $0x160] sm:$0xff]
                %255 = vst [vmem:[%s209 + $0xb0] sm:$0xff] %v254
                %v256 = vld [vmem:[%s208 + $0x170] sm:$0xff]
                %257 = vst [vmem:[%s209 + $0xb8] sm:$0xff] %v256
                %v258 = vld [vmem:[%s208 + $0x180] sm:$0xff]
                %259 = vst [vmem:[%s209 + $0xc0] sm:$0xff] %v258
                %v260 = vld [vmem:[%s208 + $0x190] sm:$0xff]
                %261 = vst [vmem:[%s209 + $0xc8] sm:$0xff] %v260
                %v262 = vld [vmem:[%s208 + $0x1a0] sm:$0xff]
                %263 = vst [vmem:[%s209 + $0xd0] sm:$0xff] %v262
                %v264 = vld [vmem:[%s208 + $0x1b0] sm:$0xff]
                %265 = vst [vmem:[%s209 + $0xd8] sm:$0xff] %v264
                %v266 = vld [vmem:[%s208 + $0x1c0] sm:$0xff]
                %267 = vst [vmem:[%s209 + $0xe0] sm:$0xff] %v266
                %v268 = vld [vmem:[%s208 + $0x1d0] sm:$0xff]
                %269 = vst [vmem:[%s209 + $0xe8] sm:$0xff] %v268
                %v270 = vld [vmem:[%s208 + $0x1e0] sm:$0xff]
                %271 = vst [vmem:[%s209 + $0xf0] sm:$0xff] %v270
                %v272 = vld [vmem:[%s208 + $0x1f0] sm:$0xff]
                %273 = vst [vmem:[%s209 + $0xf8] sm:$0xff] %v272
                %v274 = vld [vmem:[%s208 + $0x200] sm:$0xff]
                %275 = vst [vmem:[%s209 + $0x100] sm:$0xff] %v274
                %v276 = vld [vmem:[%s208 + $0x210] sm:$0xff]
                %277 = vst [vmem:[%s209 + $0x108] sm:$0xff] %v276
                %v278 = vld [vmem:[%s208 + $0x220] sm:$0xff]
                %279 = vst [vmem:[%s209 + $0x110] sm:$0xff] %v278
                %v280 = vld [vmem:[%s208 + $0x230] sm:$0xff]
                %281 = vst [vmem:[%s209 + $0x118] sm:$0xff] %v280
                %v282 = vld [vmem:[%s208 + $0x240] sm:$0xff]
                %283 = vst [vmem:[%s209 + $0x120] sm:$0xff] %v282
                %v284 = vld [vmem:[%s208 + $0x250] sm:$0xff]
                %285 = vst [vmem:[%s209 + $0x128] sm:$0xff] %v284
                %v286 = vld [vmem:[%s208 + $0x260] sm:$0xff]
                %287 = vst [vmem:[%s209 + $0x130] sm:$0xff] %v286
                %v288 = vld [vmem:[%s208 + $0x270] sm:$0xff]
                %289 = vst [vmem:[%s209 + $0x138] sm:$0xff] %v288
                %v290 = vld [vmem:[%s208 + $0x280] sm:$0xff]
                %291 = vst [vmem:[%s209 + $0x140] sm:$0xff] %v290
                %v292 = vld [vmem:[%s208 + $0x290] sm:$0xff]
                %293 = vst [vmem:[%s209 + $0x148] sm:$0xff] %v292
                %v294 = vld [vmem:[%s208 + $0x2a0] sm:$0xff]
                %295 = vst [vmem:[%s209 + $0x150] sm:$0xff] %v294
                %v296 = vld [vmem:[%s208 + $0x2b0] sm:$0xff]
                %297 = vst [vmem:[%s209 + $0x158] sm:$0xff] %v296
                %v298 = vld [vmem:[%s208 + $0x2c0] sm:$0xff]
                %299 = vst [vmem:[%s209 + $0x160] sm:$0xff] %v298
                %v300 = vld [vmem:[%s208 + $0x2d0] sm:$0xff]
                %301 = vst [vmem:[%s209 + $0x168] sm:$0xff] %v300
                %v302 = vld [vmem:[%s208 + $0x2e0] sm:$0xff]
                %303 = vst [vmem:[%s209 + $0x170] sm:$0xff] %v302
                %v304 = vld [vmem:[%s208 + $0x2f0] sm:$0xff]
                %305 = vst [vmem:[%s209 + $0x178] sm:$0xff] %v304
                %v306 = vld [vmem:[%s208 + $0x300] sm:$0xff]
                %307 = vst [vmem:[%s209 + $0x180] sm:$0xff] %v306
                %v308 = vld [vmem:[%s208 + $0x310] sm:$0xff]
                %309 = vst [vmem:[%s209 + $0x188] sm:$0xff] %v308
                %v310 = vld [vmem:[%s208 + $0x320] sm:$0xff]
                %311 = vst [vmem:[%s209 + $0x190] sm:$0xff] %v310
                %v312 = vld [vmem:[%s208 + $0x330] sm:$0xff]
                %313 = vst [vmem:[%s209 + $0x198] sm:$0xff] %v312
                %v314 = vld [vmem:[%s208 + $0x340] sm:$0xff]
                %315 = vst [vmem:[%s209 + $0x1a0] sm:$0xff] %v314
                %v316 = vld [vmem:[%s208 + $0x350] sm:$0xff]
                %317 = vst [vmem:[%s209 + $0x1a8] sm:$0xff] %v316
                %v318 = vld [vmem:[%s208 + $0x360] sm:$0xff]
                %319 = vst [vmem:[%s209 + $0x1b0] sm:$0xff] %v318
                %v320 = vld [vmem:[%s208 + $0x370] sm:$0xff]
                %321 = vst [vmem:[%s209 + $0x1b8] sm:$0xff] %v320
                %v322 = vld [vmem:[%s208 + $0x380] sm:$0xff]
                %323 = vst [vmem:[%s209 + $0x1c0] sm:$0xff] %v322
                %v324 = vld [vmem:[%s208 + $0x390] sm:$0xff]
                %325 = vst [vmem:[%s209 + $0x1c8] sm:$0xff] %v324
                %v326 = vld [vmem:[%s208 + $0x3a0] sm:$0xff]
                %327 = vst [vmem:[%s209 + $0x1d0] sm:$0xff] %v326
                %v328 = vld [vmem:[%s208 + $0x3b0] sm:$0xff]
                %329 = vst [vmem:[%s209 + $0x1d8] sm:$0xff] %v328
                %v330 = vld [vmem:[%s208 + $0x3c0] sm:$0xff]
                %331 = vst [vmem:[%s209 + $0x1e0] sm:$0xff] %v330
                %v332 = vld [vmem:[%s208 + $0x3d0] sm:$0xff]
                %333 = vst [vmem:[%s209 + $0x1e8] sm:$0xff] %v332
                %v334 = vld [vmem:[%s208 + $0x3e0] sm:$0xff]
                %335 = vst [vmem:[%s209 + $0x1f0] sm:$0xff] %v334
                %v336 = vld [vmem:[%s208 + $0x3f0] sm:$0xff]
                %337 = vst [vmem:[%s209 + $0x1f8] sm:$0xff] %v336
              $region41: #{_lambda_.1} parent=35 // loop_footer
                %s207 = sadd.s32 1, %s203
              $region42: #{_lambda_.1} parent=35 // loop_footer_branch
                %202 = sbr.rel target = $region38
              $region43: #{_lambda_.1} parent=35 // loop_exit
                _
            $region36: #{_lambda_.1} parent=27 // pred_fallthru
              _
          $region28: #{_lambda_.1} parent=23 // pred_fallthru
            _
          %478 = vnop
        $region24: #{_lambda_.1} parent=15 // pred_fallthru
          _
        // Predicated region
        $region59: #{_lambda_.1} parent=15 // pred_check
          %p479 = pneg %p97
        $region60: #{_lambda_.1} parent=15 // pred_check_branch
          %481 = sbr.rel (%p479) target = $region62
        $region61: #{_lambda_.1} parent=15 // pred_region
          %s482 = sand.u32 %s87, 1
          %s483 = sand.u32 %s87, 1
          %s484 = smul.addr %s483, 512
          %s485 = scalar_lea.vmem [#allocation3], %s484
          %s486 = smul.addr %s21, 8
          %s487 = scalar_lea.vmem %s2, %s486
          // Predicated region
          $region63: #{_lambda_.1} parent=61 // pred_check
            _
          $region64: #{_lambda_.1} parent=61 // pred_check_branch
            %489 = sbr.rel (0) target = $region66
          $region65: #{_lambda_.1} parent=61 // pred_region
            // Predicated region
            $region67: #{_lambda_.1} parent=65 // pred_check
              _
            $region68: #{_lambda_.1} parent=65 // pred_check_branch
              %491 = sbr.rel (0) target = $region70
            $region69: #{_lambda_.1} parent=65 // pred_region
              // Predicated region
              $region82: #{_lambda_.1} parent=69 // pred_check
                _
              $region83: #{_lambda_.1} parent=69 // pred_check_branch
                %632 = sbr.rel (0) target = $region85
              $region84: #{_lambda_.1} parent=69 // pred_region
                loop: start=0, step=1, limit=1
                $region86: #{_lambda_.1} parent=84 // loop_pre_header
                  _
                $region87: #{_lambda_.1} parent=84 // loop_header
                  %s634 = sphi 0, %s638
                  %p635 = scmp.ge.s32.totalorder %s634, 1
                  %s639 = sphi %s487, %s487
                  %s640 = sphi %s485, %s485
                $region88: #{_lambda_.1} parent=84 // loop_header_branch
                  %637 = sbr.rel (%p635) target = $region92
                $region89: #{_lambda_.1} parent=84 // loop_body
                  %v641 = vld [vmem:[%s639] sm:$0xff]
                  %642 = vst [vmem:[%s640] sm:$0xff] %v641
                  %v643 = vld [vmem:[%s639 + $0x10] sm:$0xff]
                  %644 = vst [vmem:[%s640 + $0x8] sm:$0xff] %v643
                  %v645 = vld [vmem:[%s639 + $0x20] sm:$0xff]
                  %646 = vst [vmem:[%s640 + $0x10] sm:$0xff] %v645
                  %v647 = vld [vmem:[%s639 + $0x30] sm:$0xff]
                  %648 = vst [vmem:[%s640 + $0x18] sm:$0xff] %v647
                  %v649 = vld [vmem:[%s639 + $0x40] sm:$0xff]
                  %650 = vst [vmem:[%s640 + $0x20] sm:$0xff] %v649
                  %v651 = vld [vmem:[%s639 + $0x50] sm:$0xff]
                  %652 = vst [vmem:[%s640 + $0x28] sm:$0xff] %v651
                  %v653 = vld [vmem:[%s639 + $0x60] sm:$0xff]
                  %654 = vst [vmem:[%s640 + $0x30] sm:$0xff] %v653
                  %v655 = vld [vmem:[%s639 + $0x70] sm:$0xff]
                  %656 = vst [vmem:[%s640 + $0x38] sm:$0xff] %v655
                  %v657 = vld [vmem:[%s639 + $0x80] sm:$0xff]
                  %658 = vst [vmem:[%s640 + $0x40] sm:$0xff] %v657
                  %v659 = vld [vmem:[%s639 + $0x90] sm:$0xff]
                  %660 = vst [vmem:[%s640 + $0x48] sm:$0xff] %v659
                  %v661 = vld [vmem:[%s639 + $0xa0] sm:$0xff]
                  %662 = vst [vmem:[%s640 + $0x50] sm:$0xff] %v661
                  %v663 = vld [vmem:[%s639 + $0xb0] sm:$0xff]
                  %664 = vst [vmem:[%s640 + $0x58] sm:$0xff] %v663
                  %v665 = vld [vmem:[%s639 + $0xc0] sm:$0xff]
                  %666 = vst [vmem:[%s640 + $0x60] sm:$0xff] %v665
                  %v667 = vld [vmem:[%s639 + $0xd0] sm:$0xff]
                  %668 = vst [vmem:[%s640 + $0x68] sm:$0xff] %v667
                  %v669 = vld [vmem:[%s639 + $0xe0] sm:$0xff]
                  %670 = vst [vmem:[%s640 + $0x70] sm:$0xff] %v669
                  %v671 = vld [vmem:[%s639 + $0xf0] sm:$0xff]
                  %672 = vst [vmem:[%s640 + $0x78] sm:$0xff] %v671
                  %v673 = vld [vmem:[%s639 + $0x100] sm:$0xff]
                  %674 = vst [vmem:[%s640 + $0x80] sm:$0xff] %v673
                  %v675 = vld [vmem:[%s639 + $0x110] sm:$0xff]
                  %676 = vst [vmem:[%s640 + $0x88] sm:$0xff] %v675
                  %v677 = vld [vmem:[%s639 + $0x120] sm:$0xff]
                  %678 = vst [vmem:[%s640 + $0x90] sm:$0xff] %v677
                  %v679 = vld [vmem:[%s639 + $0x130] sm:$0xff]
                  %680 = vst [vmem:[%s640 + $0x98] sm:$0xff] %v679
                  %v681 = vld [vmem:[%s639 + $0x140] sm:$0xff]
                  %682 = vst [vmem:[%s640 + $0xa0] sm:$0xff] %v681
                  %v683 = vld [vmem:[%s639 + $0x150] sm:$0xff]
                  %684 = vst [vmem:[%s640 + $0xa8] sm:$0xff] %v683
                  %v685 = vld [vmem:[%s639 + $0x160] sm:$0xff]
                  %686 = vst [vmem:[%s640 + $0xb0] sm:$0xff] %v685
                  %v687 = vld [vmem:[%s639 + $0x170] sm:$0xff]
                  %688 = vst [vmem:[%s640 + $0xb8] sm:$0xff] %v687
                  %v689 = vld [vmem:[%s639 + $0x180] sm:$0xff]
                  %690 = vst [vmem:[%s640 + $0xc0] sm:$0xff] %v689
                  %v691 = vld [vmem:[%s639 + $0x190] sm:$0xff]
                  %692 = vst [vmem:[%s640 + $0xc8] sm:$0xff] %v691
                  %v693 = vld [vmem:[%s639 + $0x1a0] sm:$0xff]
                  %694 = vst [vmem:[%s640 + $0xd0] sm:$0xff] %v693
                  %v695 = vld [vmem:[%s639 + $0x1b0] sm:$0xff]
                  %696 = vst [vmem:[%s640 + $0xd8] sm:$0xff] %v695
                  %v697 = vld [vmem:[%s639 + $0x1c0] sm:$0xff]
                  %698 = vst [vmem:[%s640 + $0xe0] sm:$0xff] %v697
                  %v699 = vld [vmem:[%s639 + $0x1d0] sm:$0xff]
                  %700 = vst [vmem:[%s640 + $0xe8] sm:$0xff] %v699
                  %v701 = vld [vmem:[%s639 + $0x1e0] sm:$0xff]
                  %702 = vst [vmem:[%s640 + $0xf0] sm:$0xff] %v701
                  %v703 = vld [vmem:[%s639 + $0x1f0] sm:$0xff]
                  %704 = vst [vmem:[%s640 + $0xf8] sm:$0xff] %v703
                  %v705 = vld [vmem:[%s639 + $0x200] sm:$0xff]
                  %706 = vst [vmem:[%s640 + $0x100] sm:$0xff] %v705
                  %v707 = vld [vmem:[%s639 + $0x210] sm:$0xff]
                  %708 = vst [vmem:[%s640 + $0x108] sm:$0xff] %v707
                  %v709 = vld [vmem:[%s639 + $0x220] sm:$0xff]
                  %710 = vst [vmem:[%s640 + $0x110] sm:$0xff] %v709
                  %v711 = vld [vmem:[%s639 + $0x230] sm:$0xff]
                  %712 = vst [vmem:[%s640 + $0x118] sm:$0xff] %v711
                  %v713 = vld [vmem:[%s639 + $0x240] sm:$0xff]
                  %714 = vst [vmem:[%s640 + $0x120] sm:$0xff] %v713
                  %v715 = vld [vmem:[%s639 + $0x250] sm:$0xff]
                  %716 = vst [vmem:[%s640 + $0x128] sm:$0xff] %v715
                  %v717 = vld [vmem:[%s639 + $0x260] sm:$0xff]
                  %718 = vst [vmem:[%s640 + $0x130] sm:$0xff] %v717
                  %v719 = vld [vmem:[%s639 + $0x270] sm:$0xff]
                  %720 = vst [vmem:[%s640 + $0x138] sm:$0xff] %v719
                  %v721 = vld [vmem:[%s639 + $0x280] sm:$0xff]
                  %722 = vst [vmem:[%s640 + $0x140] sm:$0xff] %v721
                  %v723 = vld [vmem:[%s639 + $0x290] sm:$0xff]
                  %724 = vst [vmem:[%s640 + $0x148] sm:$0xff] %v723
                  %v725 = vld [vmem:[%s639 + $0x2a0] sm:$0xff]
                  %726 = vst [vmem:[%s640 + $0x150] sm:$0xff] %v725
                  %v727 = vld [vmem:[%s639 + $0x2b0] sm:$0xff]
                  %728 = vst [vmem:[%s640 + $0x158] sm:$0xff] %v727
                  %v729 = vld [vmem:[%s639 + $0x2c0] sm:$0xff]
                  %730 = vst [vmem:[%s640 + $0x160] sm:$0xff] %v729
                  %v731 = vld [vmem:[%s639 + $0x2d0] sm:$0xff]
                  %732 = vst [vmem:[%s640 + $0x168] sm:$0xff] %v731
                  %v733 = vld [vmem:[%s639 + $0x2e0] sm:$0xff]
                  %734 = vst [vmem:[%s640 + $0x170] sm:$0xff] %v733
                  %v735 = vld [vmem:[%s639 + $0x2f0] sm:$0xff]
                  %736 = vst [vmem:[%s640 + $0x178] sm:$0xff] %v735
                  %v737 = vld [vmem:[%s639 + $0x300] sm:$0xff]
                  %738 = vst [vmem:[%s640 + $0x180] sm:$0xff] %v737
                  %v739 = vld [vmem:[%s639 + $0x310] sm:$0xff]
                  %740 = vst [vmem:[%s640 + $0x188] sm:$0xff] %v739
                  %v741 = vld [vmem:[%s639 + $0x320] sm:$0xff]
                  %742 = vst [vmem:[%s640 + $0x190] sm:$0xff] %v741
                  %v743 = vld [vmem:[%s639 + $0x330] sm:$0xff]
                  %744 = vst [vmem:[%s640 + $0x198] sm:$0xff] %v743
                  %v745 = vld [vmem:[%s639 + $0x340] sm:$0xff]
                  %746 = vst [vmem:[%s640 + $0x1a0] sm:$0xff] %v745
                  %v747 = vld [vmem:[%s639 + $0x350] sm:$0xff]
                  %748 = vst [vmem:[%s640 + $0x1a8] sm:$0xff] %v747
                  %v749 = vld [vmem:[%s639 + $0x360] sm:$0xff]
                  %750 = vst [vmem:[%s640 + $0x1b0] sm:$0xff] %v749
                  %v751 = vld [vmem:[%s639 + $0x370] sm:$0xff]
                  %752 = vst [vmem:[%s640 + $0x1b8] sm:$0xff] %v751
                  %v753 = vld [vmem:[%s639 + $0x380] sm:$0xff]
                  %754 = vst [vmem:[%s640 + $0x1c0] sm:$0xff] %v753
                  %v755 = vld [vmem:[%s639 + $0x390] sm:$0xff]
                  %756 = vst [vmem:[%s640 + $0x1c8] sm:$0xff] %v755
                  %v757 = vld [vmem:[%s639 + $0x3a0] sm:$0xff]
                  %758 = vst [vmem:[%s640 + $0x1d0] sm:$0xff] %v757
                  %v759 = vld [vmem:[%s639 + $0x3b0] sm:$0xff]
                  %760 = vst [vmem:[%s640 + $0x1d8] sm:$0xff] %v759
                  %v761 = vld [vmem:[%s639 + $0x3c0] sm:$0xff]
                  %762 = vst [vmem:[%s640 + $0x1e0] sm:$0xff] %v761
                  %v763 = vld [vmem:[%s639 + $0x3d0] sm:$0xff]
                  %764 = vst [vmem:[%s640 + $0x1e8] sm:$0xff] %v763
                  %v765 = vld [vmem:[%s639 + $0x3e0] sm:$0xff]
                  %766 = vst [vmem:[%s640 + $0x1f0] sm:$0xff] %v765
                  %v767 = vld [vmem:[%s639 + $0x3f0] sm:$0xff]
                  %768 = vst [vmem:[%s640 + $0x1f8] sm:$0xff] %v767
                $region90: #{_lambda_.1} parent=84 // loop_footer
                  %s638 = sadd.s32 1, %s634
                $region91: #{_lambda_.1} parent=84 // loop_footer_branch
                  %633 = sbr.rel target = $region87
                $region92: #{_lambda_.1} parent=84 // loop_exit
                  _
              $region85: #{_lambda_.1} parent=69 // pred_fallthru
                _
              // Predicated region
              $region93: #{_lambda_.1} parent=69 // pred_check
                _
              $region94: #{_lambda_.1} parent=69 // pred_check_branch
                %770 = sbr.rel target = $region96
              $region95: #{_lambda_.1} parent=69 // pred_region
                _
              $region96: #{_lambda_.1} parent=69 // pred_fallthru
                _
            $region70: #{_lambda_.1} parent=65 // pred_fallthru
              _
            // Predicated region
            $region71: #{_lambda_.1} parent=65 // pred_check
              _
            $region72: #{_lambda_.1} parent=65 // pred_check_branch
              %493 = sbr.rel target = $region74
            $region73: #{_lambda_.1} parent=65 // pred_region
              loop: start=0, step=1, limit=1
              $region75: #{_lambda_.1} parent=73 // loop_pre_header
                _
              $region76: #{_lambda_.1} parent=73 // loop_header
                %s496 = sphi 0, %s500
                %p497 = scmp.ge.s32.totalorder %s496, 1
                %s501 = sphi %s487, %s487
                %s502 = sphi %s485, %s485
              $region77: #{_lambda_.1} parent=73 // loop_header_branch
                %499 = sbr.rel (%p497) target = $region81
              $region78: #{_lambda_.1} parent=73 // loop_body
                %v503 = vld [vmem:[%s501] sm:$0xff]
                %504 = vst [vmem:[%s502] sm:$0xff] %v503
                %v505 = vld [vmem:[%s501 + $0x10] sm:$0xff]
                %506 = vst [vmem:[%s502 + $0x8] sm:$0xff] %v505
                %v507 = vld [vmem:[%s501 + $0x20] sm:$0xff]
                %508 = vst [vmem:[%s502 + $0x10] sm:$0xff] %v507
                %v509 = vld [vmem:[%s501 + $0x30] sm:$0xff]
                %510 = vst [vmem:[%s502 + $0x18] sm:$0xff] %v509
                %v511 = vld [vmem:[%s501 + $0x40] sm:$0xff]
                %512 = vst [vmem:[%s502 + $0x20] sm:$0xff] %v511
                %v513 = vld [vmem:[%s501 + $0x50] sm:$0xff]
                %514 = vst [vmem:[%s502 + $0x28] sm:$0xff] %v513
                %v515 = vld [vmem:[%s501 + $0x60] sm:$0xff]
                %516 = vst [vmem:[%s502 + $0x30] sm:$0xff] %v515
                %v517 = vld [vmem:[%s501 + $0x70] sm:$0xff]
                %518 = vst [vmem:[%s502 + $0x38] sm:$0xff] %v517
                %v519 = vld [vmem:[%s501 + $0x80] sm:$0xff]
                %520 = vst [vmem:[%s502 + $0x40] sm:$0xff] %v519
                %v521 = vld [vmem:[%s501 + $0x90] sm:$0xff]
                %522 = vst [vmem:[%s502 + $0x48] sm:$0xff] %v521
                %v523 = vld [vmem:[%s501 + $0xa0] sm:$0xff]
                %524 = vst [vmem:[%s502 + $0x50] sm:$0xff] %v523
                %v525 = vld [vmem:[%s501 + $0xb0] sm:$0xff]
                %526 = vst [vmem:[%s502 + $0x58] sm:$0xff] %v525
                %v527 = vld [vmem:[%s501 + $0xc0] sm:$0xff]
                %528 = vst [vmem:[%s502 + $0x60] sm:$0xff] %v527
                %v529 = vld [vmem:[%s501 + $0xd0] sm:$0xff]
                %530 = vst [vmem:[%s502 + $0x68] sm:$0xff] %v529
                %v531 = vld [vmem:[%s501 + $0xe0] sm:$0xff]
                %532 = vst [vmem:[%s502 + $0x70] sm:$0xff] %v531
                %v533 = vld [vmem:[%s501 + $0xf0] sm:$0xff]
                %534 = vst [vmem:[%s502 + $0x78] sm:$0xff] %v533
                %v535 = vld [vmem:[%s501 + $0x100] sm:$0xff]
                %536 = vst [vmem:[%s502 + $0x80] sm:$0xff] %v535
                %v537 = vld [vmem:[%s501 + $0x110] sm:$0xff]
                %538 = vst [vmem:[%s502 + $0x88] sm:$0xff] %v537
                %v539 = vld [vmem:[%s501 + $0x120] sm:$0xff]
                %540 = vst [vmem:[%s502 + $0x90] sm:$0xff] %v539
                %v541 = vld [vmem:[%s501 + $0x130] sm:$0xff]
                %542 = vst [vmem:[%s502 + $0x98] sm:$0xff] %v541
                %v543 = vld [vmem:[%s501 + $0x140] sm:$0xff]
                %544 = vst [vmem:[%s502 + $0xa0] sm:$0xff] %v543
                %v545 = vld [vmem:[%s501 + $0x150] sm:$0xff]
                %546 = vst [vmem:[%s502 + $0xa8] sm:$0xff] %v545
                %v547 = vld [vmem:[%s501 + $0x160] sm:$0xff]
                %548 = vst [vmem:[%s502 + $0xb0] sm:$0xff] %v547
                %v549 = vld [vmem:[%s501 + $0x170] sm:$0xff]
                %550 = vst [vmem:[%s502 + $0xb8] sm:$0xff] %v549
                %v551 = vld [vmem:[%s501 + $0x180] sm:$0xff]
                %552 = vst [vmem:[%s502 + $0xc0] sm:$0xff] %v551
                %v553 = vld [vmem:[%s501 + $0x190] sm:$0xff]
                %554 = vst [vmem:[%s502 + $0xc8] sm:$0xff] %v553
                %v555 = vld [vmem:[%s501 + $0x1a0] sm:$0xff]
                %556 = vst [vmem:[%s502 + $0xd0] sm:$0xff] %v555
                %v557 = vld [vmem:[%s501 + $0x1b0] sm:$0xff]
                %558 = vst [vmem:[%s502 + $0xd8] sm:$0xff] %v557
                %v559 = vld [vmem:[%s501 + $0x1c0] sm:$0xff]
                %560 = vst [vmem:[%s502 + $0xe0] sm:$0xff] %v559
                %v561 = vld [vmem:[%s501 + $0x1d0] sm:$0xff]
                %562 = vst [vmem:[%s502 + $0xe8] sm:$0xff] %v561
                %v563 = vld [vmem:[%s501 + $0x1e0] sm:$0xff]
                %564 = vst [vmem:[%s502 + $0xf0] sm:$0xff] %v563
                %v565 = vld [vmem:[%s501 + $0x1f0] sm:$0xff]
                %566 = vst [vmem:[%s502 + $0xf8] sm:$0xff] %v565
                %v567 = vld [vmem:[%s501 + $0x200] sm:$0xff]
                %568 = vst [vmem:[%s502 + $0x100] sm:$0xff] %v567
                %v569 = vld [vmem:[%s501 + $0x210] sm:$0xff]
                %570 = vst [vmem:[%s502 + $0x108] sm:$0xff] %v569
                %v571 = vld [vmem:[%s501 + $0x220] sm:$0xff]
                %572 = vst [vmem:[%s502 + $0x110] sm:$0xff] %v571
                %v573 = vld [vmem:[%s501 + $0x230] sm:$0xff]
                %574 = vst [vmem:[%s502 + $0x118] sm:$0xff] %v573
                %v575 = vld [vmem:[%s501 + $0x240] sm:$0xff]
                %576 = vst [vmem:[%s502 + $0x120] sm:$0xff] %v575
                %v577 = vld [vmem:[%s501 + $0x250] sm:$0xff]
                %578 = vst [vmem:[%s502 + $0x128] sm:$0xff] %v577
                %v579 = vld [vmem:[%s501 + $0x260] sm:$0xff]
                %580 = vst [vmem:[%s502 + $0x130] sm:$0xff] %v579
                %v581 = vld [vmem:[%s501 + $0x270] sm:$0xff]
                %582 = vst [vmem:[%s502 + $0x138] sm:$0xff] %v581
                %v583 = vld [vmem:[%s501 + $0x280] sm:$0xff]
                %584 = vst [vmem:[%s502 + $0x140] sm:$0xff] %v583
                %v585 = vld [vmem:[%s501 + $0x290] sm:$0xff]
                %586 = vst [vmem:[%s502 + $0x148] sm:$0xff] %v585
                %v587 = vld [vmem:[%s501 + $0x2a0] sm:$0xff]
                %588 = vst [vmem:[%s502 + $0x150] sm:$0xff] %v587
                %v589 = vld [vmem:[%s501 + $0x2b0] sm:$0xff]
                %590 = vst [vmem:[%s502 + $0x158] sm:$0xff] %v589
                %v591 = vld [vmem:[%s501 + $0x2c0] sm:$0xff]
                %592 = vst [vmem:[%s502 + $0x160] sm:$0xff] %v591
                %v593 = vld [vmem:[%s501 + $0x2d0] sm:$0xff]
                %594 = vst [vmem:[%s502 + $0x168] sm:$0xff] %v593
                %v595 = vld [vmem:[%s501 + $0x2e0] sm:$0xff]
                %596 = vst [vmem:[%s502 + $0x170] sm:$0xff] %v595
                %v597 = vld [vmem:[%s501 + $0x2f0] sm:$0xff]
                %598 = vst [vmem:[%s502 + $0x178] sm:$0xff] %v597
                %v599 = vld [vmem:[%s501 + $0x300] sm:$0xff]
                %600 = vst [vmem:[%s502 + $0x180] sm:$0xff] %v599
                %v601 = vld [vmem:[%s501 + $0x310] sm:$0xff]
                %602 = vst [vmem:[%s502 + $0x188] sm:$0xff] %v601
                %v603 = vld [vmem:[%s501 + $0x320] sm:$0xff]
                %604 = vst [vmem:[%s502 + $0x190] sm:$0xff] %v603
                %v605 = vld [vmem:[%s501 + $0x330] sm:$0xff]
                %606 = vst [vmem:[%s502 + $0x198] sm:$0xff] %v605
                %v607 = vld [vmem:[%s501 + $0x340] sm:$0xff]
                %608 = vst [vmem:[%s502 + $0x1a0] sm:$0xff] %v607
                %v609 = vld [vmem:[%s501 + $0x350] sm:$0xff]
                %610 = vst [vmem:[%s502 + $0x1a8] sm:$0xff] %v609
                %v611 = vld [vmem:[%s501 + $0x360] sm:$0xff]
                %612 = vst [vmem:[%s502 + $0x1b0] sm:$0xff] %v611
                %v613 = vld [vmem:[%s501 + $0x370] sm:$0xff]
                %614 = vst [vmem:[%s502 + $0x1b8] sm:$0xff] %v613
                %v615 = vld [vmem:[%s501 + $0x380] sm:$0xff]
                %616 = vst [vmem:[%s502 + $0x1c0] sm:$0xff] %v615
                %v617 = vld [vmem:[%s501 + $0x390] sm:$0xff]
                %618 = vst [vmem:[%s502 + $0x1c8] sm:$0xff] %v617
                %v619 = vld [vmem:[%s501 + $0x3a0] sm:$0xff]
                %620 = vst [vmem:[%s502 + $0x1d0] sm:$0xff] %v619
                %v621 = vld [vmem:[%s501 + $0x3b0] sm:$0xff]
                %622 = vst [vmem:[%s502 + $0x1d8] sm:$0xff] %v621
                %v623 = vld [vmem:[%s501 + $0x3c0] sm:$0xff]
                %624 = vst [vmem:[%s502 + $0x1e0] sm:$0xff] %v623
                %v625 = vld [vmem:[%s501 + $0x3d0] sm:$0xff]
                %626 = vst [vmem:[%s502 + $0x1e8] sm:$0xff] %v625
                %v627 = vld [vmem:[%s501 + $0x3e0] sm:$0xff]
                %628 = vst [vmem:[%s502 + $0x1f0] sm:$0xff] %v627
                %v629 = vld [vmem:[%s501 + $0x3f0] sm:$0xff]
                %630 = vst [vmem:[%s502 + $0x1f8] sm:$0xff] %v629
              $region79: #{_lambda_.1} parent=73 // loop_footer
                %s500 = sadd.s32 1, %s496
              $region80: #{_lambda_.1} parent=73 // loop_footer_branch
                %495 = sbr.rel target = $region76
              $region81: #{_lambda_.1} parent=73 // loop_exit
                _
            $region74: #{_lambda_.1} parent=65 // pred_fallthru
              _
          $region66: #{_lambda_.1} parent=61 // pred_fallthru
            _
          %771 = vnop
        $region62: #{_lambda_.1} parent=15 // pred_fallthru
          _
        // Predicated region
        $region97: #{_lambda_.1} parent=15 // pred_check
          %p772 = pneg %p123
        $region98: #{_lambda_.1} parent=15 // pred_check_branch
          %774 = sbr.rel (%p772) target = $region100
        $region99: #{_lambda_.1} parent=15 // pred_region
          %p775 = scmp.lt.s32.totalorder %s21, 1
          %s776 = scalar_select %p775, %s21, 1
          %s777 = scalar_lea.vmem %s3, %s776
        $region100: #{_lambda_.1} parent=15 // pred_fallthru
          _
      $region16: #{_lambda_.1} parent=5 // pred_fallthru
        _
      %p778 = scmp.le.s32.totalorder 1, %s13
      %p779 = scmp.lt.s32.totalorder %s13, 5
      %p780 = pnand %p778, %p779
      %p781 = pneg %p780
      // Predicated region
      $region101: #{_lambda_.1} parent=5 // pred_check
        _
      $region102: #{_lambda_.1} parent=5 // pred_check_branch
        %783 = sbr.rel (%p780) target = $region104
      $region103: #{_lambda_.1} parent=5 // pred_region
        %s784 = ssub.s32 %s13, 1
        %s785 = sand.u32 %s64, 1
        %s786 = sand.u32 %s64, 1
        %s787 = smul.addr %s786, 512
        %s788 = scalar_lea.vmem [#allocation2], %s787
        // Predicated region
        $region105: #{_lambda_.1} parent=103 // pred_check
          %p789 = pneg %p77
        $region106: #{_lambda_.1} parent=103 // pred_check_branch
          %791 = sbr.rel (%p789) target = $region108
        $region107: #{_lambda_.1} parent=103 // pred_region
          _
        $region108: #{_lambda_.1} parent=103 // pred_fallthru
          _
        %s792 = sand.u32 %s90, 1
        %s793 = sand.u32 %s90, 1
        %s794 = smul.addr %s793, 512
        %s795 = scalar_lea.vmem [#allocation3], %s794
        // Predicated region
        $region109: #{_lambda_.1} parent=103 // pred_check
          %p796 = pneg %p103
        $region110: #{_lambda_.1} parent=103 // pred_check_branch
          %798 = sbr.rel (%p796) target = $region112
        $region111: #{_lambda_.1} parent=103 // pred_region
          _
        $region112: #{_lambda_.1} parent=103 // pred_fallthru
          _
        %s799 = smul.u32 16, %s22
        %p800 = scmp.lt.s32.totalorder %s799, 31
        %s801 = scalar_select %p800, %s799, 31
        %s802 = smul.addr %s801, 4
        %s803 = smul.addr %s802, 8
        %s804 = scalar_lea.vmem %s0, %s803
        %p805 = pneg %p51
        %p806 = pneg %p48
        %s807 = sand.u32 %s64, 1
        %s808 = sand.u32 %s64, 1
        %s809 = smul.addr %s808, 512
        %s810 = scalar_lea.vmem [#allocation2], %s809
        %p811 = pneg %p77
        %p812 = pneg %p74
        %s813 = sand.u32 %s90, 1
        %s814 = sand.u32 %s90, 1
        %s815 = smul.addr %s814, 512
        %s816 = scalar_lea.vmem [#allocation3], %s815
        %p817 = pneg %p103
        %p818 = pneg %p100
        %p819 = scmp.lt.s32.totalorder %s23, 1
        %s820 = scalar_select %p819, %s23, 1
        %s821 = scalar_lea.vmem %s3, %s820
        %p822 = pneg %p129
        %p823 = pneg %p126
        %p824 = pneg %p157
        %p825 = pneg %p154
        %s826 = sand.u32 %s144, 1
        %s827 = scalar_lea.sflag [#allocation5], %s826
        %s828 = sand.u32 %s144, 1
        %s829 = smul.addr %s828, 128
        %s830 = scalar_lea.vmem [#allocation4], %s829
        %s831 = smul.u32 16, %s22
        %p832 = scmp.lt.s32.totalorder %s831, 31
        %s833 = scalar_select %p832, %s831, 31
        %s834 = smul.addr %s833, 4
        %s835 = smul.addr %s834, 8
        %s836 = scalar_lea.vmem %s0, %s835
        %s837 = smul.u32 16, %s22
        %p838 = scmp.lt.s32.totalorder %s23, 1
        %s839 = scalar_select %p838, %s23, 1
        %s840 = scalar_lea.vmem %s3, %s839
        %s841 = smul.u32 16, %s22
        %v842 = vld [vmem:[%s788] sm:$0xff]
        %v843 = vld [vmem:[%s788 + $0x8] sm:$0xff]
        %v844 = vld [vmem:[%s788 + $0x10] sm:$0xff]
        %v845 = vld [vmem:[%s788 + $0x18] sm:$0xff]
        %v846 = vld [vmem:[%s788 + $0x20] sm:$0xff]
        %v847 = vld [vmem:[%s788 + $0x28] sm:$0xff]
        %v848 = vld [vmem:[%s788 + $0x30] sm:$0xff]
        %v849 = vld [vmem:[%s788 + $0x38] sm:$0xff]
        %v850 = vld [vmem:[%s788 + $0x40] sm:$0xff]
        %v851 = vld [vmem:[%s788 + $0x48] sm:$0xff]
        %v852 = vld [vmem:[%s788 + $0x50] sm:$0xff]
        %v853 = vld [vmem:[%s788 + $0x58] sm:$0xff]
        %v854 = vld [vmem:[%s788 + $0x60] sm:$0xff]
        %v855 = vld [vmem:[%s788 + $0x68] sm:$0xff]
        %v856 = vld [vmem:[%s788 + $0x70] sm:$0xff]
        %v857 = vld [vmem:[%s788 + $0x78] sm:$0xff]
        %v858 = vld [vmem:[%s788 + $0x80] sm:$0xff]
        %v859 = vld [vmem:[%s788 + $0x88] sm:$0xff]
        %v860 = vld [vmem:[%s788 + $0x90] sm:$0xff]
        %v861 = vld [vmem:[%s788 + $0x98] sm:$0xff]
        %v862 = vld [vmem:[%s788 + $0xa0] sm:$0xff]
        %v863 = vld [vmem:[%s788 + $0xa8] sm:$0xff]
        %v864 = vld [vmem:[%s788 + $0xb0] sm:$0xff]
        %v865 = vld [vmem:[%s788 + $0xb8] sm:$0xff]
        %v866 = vld [vmem:[%s788 + $0xc0] sm:$0xff]
        %v867 = vld [vmem:[%s788 + $0xc8] sm:$0xff]
        %v868 = vld [vmem:[%s788 + $0xd0] sm:$0xff]
        %v869 = vld [vmem:[%s788 + $0xd8] sm:$0xff]
        %v870 = vld [vmem:[%s788 + $0xe0] sm:$0xff]
        %v871 = vld [vmem:[%s788 + $0xe8] sm:$0xff]
        %v872 = vld [vmem:[%s788 + $0xf0] sm:$0xff]
        %v873 = vld [vmem:[%s788 + $0xf8] sm:$0xff]
        %v874 = vld [vmem:[%s788 + $0x100] sm:$0xff]
        %v875 = vld [vmem:[%s788 + $0x108] sm:$0xff]
        %v876 = vld [vmem:[%s788 + $0x110] sm:$0xff]
        %v877 = vld [vmem:[%s788 + $0x118] sm:$0xff]
        %v878 = vld [vmem:[%s788 + $0x120] sm:$0xff]
        %v879 = vld [vmem:[%s788 + $0x128] sm:$0xff]
        %v880 = vld [vmem:[%s788 + $0x130] sm:$0xff]
        %v881 = vld [vmem:[%s788 + $0x138] sm:$0xff]
        %v882 = vld [vmem:[%s788 + $0x140] sm:$0xff]
        %v883 = vld [vmem:[%s788 + $0x148] sm:$0xff]
        %v884 = vld [vmem:[%s788 + $0x150] sm:$0xff]
        %v885 = vld [vmem:[%s788 + $0x158] sm:$0xff]
        %v886 = vld [vmem:[%s788 + $0x160] sm:$0xff]
        %v887 = vld [vmem:[%s788 + $0x168] sm:$0xff]
        %v888 = vld [vmem:[%s788 + $0x170] sm:$0xff]
        %v889 = vld [vmem:[%s788 + $0x178] sm:$0xff]
        %v890 = vld [vmem:[%s788 + $0x180] sm:$0xff]
        %v891 = vld [vmem:[%s788 + $0x188] sm:$0xff]
        %v892 = vld [vmem:[%s788 + $0x190] sm:$0xff]
        %v893 = vld [vmem:[%s788 + $0x198] sm:$0xff]
        %v894 = vld [vmem:[%s788 + $0x1a0] sm:$0xff]
        %v895 = vld [vmem:[%s788 + $0x1a8] sm:$0xff]
        %v896 = vld [vmem:[%s788 + $0x1b0] sm:$0xff]
        %v897 = vld [vmem:[%s788 + $0x1b8] sm:$0xff]
        %v898 = vld [vmem:[%s788 + $0x1c0] sm:$0xff]
        %v899 = vld [vmem:[%s788 + $0x1c8] sm:$0xff]
        %v900 = vld [vmem:[%s788 + $0x1d0] sm:$0xff]
        %v901 = vld [vmem:[%s788 + $0x1d8] sm:$0xff]
        %v902 = vld [vmem:[%s788 + $0x1e0] sm:$0xff]
        %v903 = vld [vmem:[%s788 + $0x1e8] sm:$0xff]
        %v904 = vld [vmem:[%s788 + $0x1f0] sm:$0xff]
        %v905 = vld [vmem:[%s788 + $0x1f8] sm:$0xff]
        %v906 = vld [vmem:[%s795] sm:$0xff]
        %v907 = vld [vmem:[%s795 + $0x8] sm:$0xff]
        %v908 = vld [vmem:[%s795 + $0x10] sm:$0xff]
        %v909 = vld [vmem:[%s795 + $0x18] sm:$0xff]
        %v910 = vld [vmem:[%s795 + $0x20] sm:$0xff]
        %v911 = vld [vmem:[%s795 + $0x28] sm:$0xff]
        %v912 = vld [vmem:[%s795 + $0x30] sm:$0xff]
        %v913 = vld [vmem:[%s795 + $0x38] sm:$0xff]
        %v914 = vld [vmem:[%s795 + $0x40] sm:$0xff]
        %v915 = vld [vmem:[%s795 + $0x48] sm:$0xff]
        %v916 = vld [vmem:[%s795 + $0x50] sm:$0xff]
        %v917 = vld [vmem:[%s795 + $0x58] sm:$0xff]
        %v918 = vld [vmem:[%s795 + $0x60] sm:$0xff]
        %v919 = vld [vmem:[%s795 + $0x68] sm:$0xff]
        %v920 = vld [vmem:[%s795 + $0x70] sm:$0xff]
        %v921 = vld [vmem:[%s795 + $0x78] sm:$0xff]
        %v922 = vld [vmem:[%s795 + $0x80] sm:$0xff]
        %v923 = vld [vmem:[%s795 + $0x88] sm:$0xff]
        %v924 = vld [vmem:[%s795 + $0x90] sm:$0xff]
        %v925 = vld [vmem:[%s795 + $0x98] sm:$0xff]
        %v926 = vld [vmem:[%s795 + $0xa0] sm:$0xff]
        %v927 = vld [vmem:[%s795 + $0xa8] sm:$0xff]
        %v928 = vld [vmem:[%s795 + $0xb0] sm:$0xff]
        %v929 = vld [vmem:[%s795 + $0xb8] sm:$0xff]
        %v930 = vld [vmem:[%s795 + $0xc0] sm:$0xff]
        %v931 = vld [vmem:[%s795 + $0xc8] sm:$0xff]
        %v932 = vld [vmem:[%s795 + $0xd0] sm:$0xff]
        %v933 = vld [vmem:[%s795 + $0xd8] sm:$0xff]
        %v934 = vld [vmem:[%s795 + $0xe0] sm:$0xff]
        %v935 = vld [vmem:[%s795 + $0xe8] sm:$0xff]
        %v936 = vld [vmem:[%s795 + $0xf0] sm:$0xff]
        %v937 = vld [vmem:[%s795 + $0xf8] sm:$0xff]
        %v938 = vld [vmem:[%s795 + $0x100] sm:$0xff]
        %v939 = vld [vmem:[%s795 + $0x108] sm:$0xff]
        %v940 = vld [vmem:[%s795 + $0x110] sm:$0xff]
        %v941 = vld [vmem:[%s795 + $0x118] sm:$0xff]
        %v942 = vld [vmem:[%s795 + $0x120] sm:$0xff]
        %v943 = vld [vmem:[%s795 + $0x128] sm:$0xff]
        %v944 = vld [vmem:[%s795 + $0x130] sm:$0xff]
        %v945 = vld [vmem:[%s795 + $0x138] sm:$0xff]
        %v946 = vld [vmem:[%s795 + $0x140] sm:$0xff]
        %v947 = vld [vmem:[%s795 + $0x148] sm:$0xff]
        %v948 = vld [vmem:[%s795 + $0x150] sm:$0xff]
        %v949 = vld [vmem:[%s795 + $0x158] sm:$0xff]
        %v950 = vld [vmem:[%s795 + $0x160] sm:$0xff]
        %v951 = vld [vmem:[%s795 + $0x168] sm:$0xff]
        %v952 = vld [vmem:[%s795 + $0x170] sm:$0xff]
        %v953 = vld [vmem:[%s795 + $0x178] sm:$0xff]
        %v954 = vld [vmem:[%s795 + $0x180] sm:$0xff]
        %v955 = vld [vmem:[%s795 + $0x188] sm:$0xff]
        %v956 = vld [vmem:[%s795 + $0x190] sm:$0xff]
        %v957 = vld [vmem:[%s795 + $0x198] sm:$0xff]
        %v958 = vld [vmem:[%s795 + $0x1a0] sm:$0xff]
        %v959 = vld [vmem:[%s795 + $0x1a8] sm:$0xff]
        %v960 = vld [vmem:[%s795 + $0x1b0] sm:$0xff]
        %v961 = vld [vmem:[%s795 + $0x1b8] sm:$0xff]
        %v962 = vld [vmem:[%s795 + $0x1c0] sm:$0xff]
        %v963 = vld [vmem:[%s795 + $0x1c8] sm:$0xff]
        %v964 = vld [vmem:[%s795 + $0x1d0] sm:$0xff]
        %v965 = vld [vmem:[%s795 + $0x1d8] sm:$0xff]
        %v966 = vld [vmem:[%s795 + $0x1e0] sm:$0xff]
        %v967 = vld [vmem:[%s795 + $0x1e8] sm:$0xff]
        %v968 = vld [vmem:[%s795 + $0x1f0] sm:$0xff]
        %v969 = vld [vmem:[%s795 + $0x1f8] sm:$0xff]
        %v970 = vand.u32 2147483647, %v842
        %v971 = vand.u32 2147483647, %v843
        %v972 = vand.u32 2147483647, %v844
        %v973 = vand.u32 2147483647, %v845
        %v974 = vand.u32 2147483647, %v846
        %v975 = vand.u32 2147483647, %v847
        %v976 = vand.u32 2147483647, %v848
        %v977 = vand.u32 2147483647, %v849
        %v978 = vand.u32 2147483647, %v850
        %v979 = vand.u32 2147483647, %v851
        %v980 = vand.u32 2147483647, %v852
        %v981 = vand.u32 2147483647, %v853
        %v982 = vand.u32 2147483647, %v854
        %v983 = vand.u32 2147483647, %v855
        %v984 = vand.u32 2147483647, %v856
        %v985 = vand.u32 2147483647, %v857
        %v986 = vand.u32 2147483647, %v858
        %v987 = vand.u32 2147483647, %v859
        %v988 = vand.u32 2147483647, %v860
        %v989 = vand.u32 2147483647, %v861
        %v990 = vand.u32 2147483647, %v862
        %v991 = vand.u32 2147483647, %v863
        %v992 = vand.u32 2147483647, %v864
        %v993 = vand.u32 2147483647, %v865
        %v994 = vand.u32 2147483647, %v866
        %v995 = vand.u32 2147483647, %v867
        %v996 = vand.u32 2147483647, %v868
        %v997 = vand.u32 2147483647, %v869
        %v998 = vand.u32 2147483647, %v870
        %v999 = vand.u32 2147483647, %v871
        %v1000 = vand.u32 2147483647, %v872
        %v1001 = vand.u32 2147483647, %v873
        %v1002 = vand.u32 2147483647, %v874
        %v1003 = vand.u32 2147483647, %v875
        %v1004 = vand.u32 2147483647, %v876
        %v1005 = vand.u32 2147483647, %v877
        %v1006 = vand.u32 2147483647, %v878
        %v1007 = vand.u32 2147483647, %v879
        %v1008 = vand.u32 2147483647, %v880
        %v1009 = vand.u32 2147483647, %v881
        %v1010 = vand.u32 2147483647, %v882
        %v1011 = vand.u32 2147483647, %v883
        %v1012 = vand.u32 2147483647, %v884
        %v1013 = vand.u32 2147483647, %v885
        %v1014 = vand.u32 2147483647, %v886
        %v1015 = vand.u32 2147483647, %v887
        %v1016 = vand.u32 2147483647, %v888
        %v1017 = vand.u32 2147483647, %v889
        %v1018 = vand.u32 2147483647, %v890
        %v1019 = vand.u32 2147483647, %v891
        %v1020 = vand.u32 2147483647, %v892
        %v1021 = vand.u32 2147483647, %v893
        %v1022 = vand.u32 2147483647, %v894
        %v1023 = vand.u32 2147483647, %v895
        %v1024 = vand.u32 2147483647, %v896
        %v1025 = vand.u32 2147483647, %v897
        %v1026 = vand.u32 2147483647, %v898
        %v1027 = vand.u32 2147483647, %v899
        %v1028 = vand.u32 2147483647, %v900
        %v1029 = vand.u32 2147483647, %v901
        %v1030 = vand.u32 2147483647, %v902
        %v1031 = vand.u32 2147483647, %v903
        %v1032 = vand.u32 2147483647, %v904
        %v1033 = vand.u32 2147483647, %v905
        %v1034 = vadd.f32 %v970, 1e-08
        %v1035 = vadd.f32 %v971, 1e-08
        %v1036 = vadd.f32 %v972, 1e-08
        %v1037 = vadd.f32 %v973, 1e-08
        %v1038 = vadd.f32 %v974, 1e-08
        %v1039 = vadd.f32 %v975, 1e-08
        %v1040 = vadd.f32 %v976, 1e-08
        %v1041 = vadd.f32 %v977, 1e-08
        %v1042 = vadd.f32 %v978, 1e-08
        %v1043 = vadd.f32 %v979, 1e-08
        %v1044 = vadd.f32 %v980, 1e-08
        %v1045 = vadd.f32 %v981, 1e-08
        %v1046 = vadd.f32 %v982, 1e-08
        %v1047 = vadd.f32 %v983, 1e-08
        %v1048 = vadd.f32 %v984, 1e-08
        %v1049 = vadd.f32 %v985, 1e-08
        %v1050 = vadd.f32 %v986, 1e-08
        %v1051 = vadd.f32 %v987, 1e-08
        %v1052 = vadd.f32 %v988, 1e-08
        %v1053 = vadd.f32 %v989, 1e-08
        %v1054 = vadd.f32 %v990, 1e-08
        %v1055 = vadd.f32 %v991, 1e-08
        %v1056 = vadd.f32 %v992, 1e-08
        %v1057 = vadd.f32 %v993, 1e-08
        %v1058 = vadd.f32 %v994, 1e-08
        %v1059 = vadd.f32 %v995, 1e-08
        %v1060 = vadd.f32 %v996, 1e-08
        %v1061 = vadd.f32 %v997, 1e-08
        %v1062 = vadd.f32 %v998, 1e-08
        %v1063 = vadd.f32 %v999, 1e-08
        %v1064 = vadd.f32 %v1000, 1e-08
        %v1065 = vadd.f32 %v1001, 1e-08
        %v1066 = vadd.f32 %v1002, 1e-08
        %v1067 = vadd.f32 %v1003, 1e-08
        %v1068 = vadd.f32 %v1004, 1e-08
        %v1069 = vadd.f32 %v1005, 1e-08
        %v1070 = vadd.f32 %v1006, 1e-08
        %v1071 = vadd.f32 %v1007, 1e-08
        %v1072 = vadd.f32 %v1008, 1e-08
        %v1073 = vadd.f32 %v1009, 1e-08
        %v1074 = vadd.f32 %v1010, 1e-08
        %v1075 = vadd.f32 %v1011, 1e-08
        %v1076 = vadd.f32 %v1012, 1e-08
        %v1077 = vadd.f32 %v1013, 1e-08
        %v1078 = vadd.f32 %v1014, 1e-08
        %v1079 = vadd.f32 %v1015, 1e-08
        %v1080 = vadd.f32 %v1016, 1e-08
        %v1081 = vadd.f32 %v1017, 1e-08
        %v1082 = vadd.f32 %v1018, 1e-08
        %v1083 = vadd.f32 %v1019, 1e-08
        %v1084 = vadd.f32 %v1020, 1e-08
        %v1085 = vadd.f32 %v1021, 1e-08
        %v1086 = vadd.f32 %v1022, 1e-08
        %v1087 = vadd.f32 %v1023, 1e-08
        %v1088 = vadd.f32 %v1024, 1e-08
        %v1089 = vadd.f32 %v1025, 1e-08
        %v1090 = vadd.f32 %v1026, 1e-08
        %v1091 = vadd.f32 %v1027, 1e-08
        %v1092 = vadd.f32 %v1028, 1e-08
        %v1093 = vadd.f32 %v1029, 1e-08
        %v1094 = vadd.f32 %v1030, 1e-08
        %v1095 = vadd.f32 %v1031, 1e-08
        %v1096 = vadd.f32 %v1032, 1e-08
        %v1097 = vadd.f32 %v1033, 1e-08
        %v1098 = vlog2.pop %v1034
        %v1099 = vmul.f32 %v1098, 0.6931472
        %v1100 = vlog2.pop %v1035
        %v1101 = vmul.f32 %v1100, 0.6931472
        %v1102 = vlog2.pop %v1036
        %v1103 = vmul.f32 %v1102, 0.6931472
        %v1104 = vlog2.pop %v1037
        %v1105 = vmul.f32 %v1104, 0.6931472
        %v1106 = vlog2.pop %v1038
        %v1107 = vmul.f32 %v1106, 0.6931472
        %v1108 = vlog2.pop %v1039
        %v1109 = vmul.f32 %v1108, 0.6931472
        %v1110 = vlog2.pop %v1040
        %v1111 = vmul.f32 %v1110, 0.6931472
        %v1112 = vlog2.pop %v1041
        %v1113 = vmul.f32 %v1112, 0.6931472
        %v1114 = vlog2.pop %v1042
        %v1115 = vmul.f32 %v1114, 0.6931472
        %v1116 = vlog2.pop %v1043
        %v1117 = vmul.f32 %v1116, 0.6931472
        %v1118 = vlog2.pop %v1044
        %v1119 = vmul.f32 %v1118, 0.6931472
        %v1120 = vlog2.pop %v1045
        %v1121 = vmul.f32 %v1120, 0.6931472
        %v1122 = vlog2.pop %v1046
        %v1123 = vmul.f32 %v1122, 0.6931472
        %v1124 = vlog2.pop %v1047
        %v1125 = vmul.f32 %v1124, 0.6931472
        %v1126 = vlog2.pop %v1048
        %v1127 = vmul.f32 %v1126, 0.6931472
        %v1128 = vlog2.pop %v1049
        %v1129 = vmul.f32 %v1128, 0.6931472
        %v1130 = vlog2.pop %v1050
        %v1131 = vmul.f32 %v1130, 0.6931472
        %v1132 = vlog2.pop %v1051
        %v1133 = vmul.f32 %v1132, 0.6931472
        %v1134 = vlog2.pop %v1052
        %v1135 = vmul.f32 %v1134, 0.6931472
        %v1136 = vlog2.pop %v1053
        %v1137 = vmul.f32 %v1136, 0.6931472
        %v1138 = vlog2.pop %v1054
        %v1139 = vmul.f32 %v1138, 0.6931472
        %v1140 = vlog2.pop %v1055
        %v1141 = vmul.f32 %v1140, 0.6931472
        %v1142 = vlog2.pop %v1056
        %v1143 = vmul.f32 %v1142, 0.6931472
        %v1144 = vlog2.pop %v1057
        %v1145 = vmul.f32 %v1144, 0.6931472
        %v1146 = vlog2.pop %v1058
        %v1147 = vmul.f32 %v1146, 0.6931472
        %v1148 = vlog2.pop %v1059
        %v1149 = vmul.f32 %v1148, 0.6931472
        %v1150 = vlog2.pop %v1060
        %v1151 = vmul.f32 %v1150, 0.6931472
        %v1152 = vlog2.pop %v1061
        %v1153 = vmul.f32 %v1152, 0.6931472
        %v1154 = vlog2.pop %v1062
        %v1155 = vmul.f32 %v1154, 0.6931472
        %v1156 = vlog2.pop %v1063
        %v1157 = vmul.f32 %v1156, 0.6931472
        %v1158 = vlog2.pop %v1064
        %v1159 = vmul.f32 %v1158, 0.6931472
        %v1160 = vlog2.pop %v1065
        %v1161 = vmul.f32 %v1160, 0.6931472
        %v1162 = vlog2.pop %v1066
        %v1163 = vmul.f32 %v1162, 0.6931472
        %v1164 = vlog2.pop %v1067
        %v1165 = vmul.f32 %v1164, 0.6931472
        %v1166 = vlog2.pop %v1068
        %v1167 = vmul.f32 %v1166, 0.6931472
        %v1168 = vlog2.pop %v1069
        %v1169 = vmul.f32 %v1168, 0.6931472
        %v1170 = vlog2.pop %v1070
        %v1171 = vmul.f32 %v1170, 0.6931472
        %v1172 = vlog2.pop %v1071
        %v1173 = vmul.f32 %v1172, 0.6931472
        %v1174 = vlog2.pop %v1072
        %v1175 = vmul.f32 %v1174, 0.6931472
        %v1176 = vlog2.pop %v1073
        %v1177 = vmul.f32 %v1176, 0.6931472
        %v1178 = vlog2.pop %v1074
        %v1179 = vmul.f32 %v1178, 0.6931472
        %v1180 = vlog2.pop %v1075
        %v1181 = vmul.f32 %v1180, 0.6931472
        %v1182 = vlog2.pop %v1076
        %v1183 = vmul.f32 %v1182, 0.6931472
        %v1184 = vlog2.pop %v1077
        %v1185 = vmul.f32 %v1184, 0.6931472
        %v1186 = vlog2.pop %v1078
        %v1187 = vmul.f32 %v1186, 0.6931472
        %v1188 = vlog2.pop %v1079
        %v1189 = vmul.f32 %v1188, 0.6931472
        %v1190 = vlog2.pop %v1080
        %v1191 = vmul.f32 %v1190, 0.6931472
        %v1192 = vlog2.pop %v1081
        %v1193 = vmul.f32 %v1192, 0.6931472
        %v1194 = vlog2.pop %v1082
        %v1195 = vmul.f32 %v1194, 0.6931472
        %v1196 = vlog2.pop %v1083
        %v1197 = vmul.f32 %v1196, 0.6931472
        %v1198 = vlog2.pop %v1084
        %v1199 = vmul.f32 %v1198, 0.6931472
        %v1200 = vlog2.pop %v1085
        %v1201 = vmul.f32 %v1200, 0.6931472
        %v1202 = vlog2.pop %v1086
        %v1203 = vmul.f32 %v1202, 0.6931472
        %v1204 = vlog2.pop %v1087
        %v1205 = vmul.f32 %v1204, 0.6931472
        %v1206 = vlog2.pop %v1088
        %v1207 = vmul.f32 %v1206, 0.6931472
        %v1208 = vlog2.pop %v1089
        %v1209 = vmul.f32 %v1208, 0.6931472
        %v1210 = vlog2.pop %v1090
        %v1211 = vmul.f32 %v1210, 0.6931472
        %v1212 = vlog2.pop %v1091
        %v1213 = vmul.f32 %v1212, 0.6931472
        %v1214 = vlog2.pop %v1092
        %v1215 = vmul.f32 %v1214, 0.6931472
        %v1216 = vlog2.pop %v1093
        %v1217 = vmul.f32 %v1216, 0.6931472
        %v1218 = vlog2.pop %v1094
        %v1219 = vmul.f32 %v1218, 0.6931472
        %v1220 = vlog2.pop %v1095
        %v1221 = vmul.f32 %v1220, 0.6931472
        %v1222 = vlog2.pop %v1096
        %v1223 = vmul.f32 %v1222, 0.6931472
        %v1224 = vlog2.pop %v1097
        %v1225 = vmul.f32 %v1224, 0.6931472
        %v1226 = vmul.f32 %v1099, 2.0
        %v1227 = vmul.f32 %v1101, 2.0
        %v1228 = vmul.f32 %v1103, 2.0
        %v1229 = vmul.f32 %v1105, 2.0
        %v1230 = vmul.f32 %v1107, 2.0
        %v1231 = vmul.f32 %v1109, 2.0
        %v1232 = vmul.f32 %v1111, 2.0
        %v1233 = vmul.f32 %v1113, 2.0
        %v1234 = vmul.f32 %v1115, 2.0
        %v1235 = vmul.f32 %v1117, 2.0
        %v1236 = vmul.f32 %v1119, 2.0
        %v1237 = vmul.f32 %v1121, 2.0
        %v1238 = vmul.f32 %v1123, 2.0
        %v1239 = vmul.f32 %v1125, 2.0
        %v1240 = vmul.f32 %v1127, 2.0
        %v1241 = vmul.f32 %v1129, 2.0
        %v1242 = vmul.f32 %v1131, 2.0
        %v1243 = vmul.f32 %v1133, 2.0
        %v1244 = vmul.f32 %v1135, 2.0
        %v1245 = vmul.f32 %v1137, 2.0
        %v1246 = vmul.f32 %v1139, 2.0
        %v1247 = vmul.f32 %v1141, 2.0
        %v1248 = vmul.f32 %v1143, 2.0
        %v1249 = vmul.f32 %v1145, 2.0
        %v1250 = vmul.f32 %v1147, 2.0
        %v1251 = vmul.f32 %v1149, 2.0
        %v1252 = vmul.f32 %v1151, 2.0
        %v1253 = vmul.f32 %v1153, 2.0
        %v1254 = vmul.f32 %v1155, 2.0
        %v1255 = vmul.f32 %v1157, 2.0
        %v1256 = vmul.f32 %v1159, 2.0
        %v1257 = vmul.f32 %v1161, 2.0
        %v1258 = vmul.f32 %v1163, 2.0
        %v1259 = vmul.f32 %v1165, 2.0
        %v1260 = vmul.f32 %v1167, 2.0
        %v1261 = vmul.f32 %v1169, 2.0
        %v1262 = vmul.f32 %v1171, 2.0
        %v1263 = vmul.f32 %v1173, 2.0
        %v1264 = vmul.f32 %v1175, 2.0
        %v1265 = vmul.f32 %v1177, 2.0
        %v1266 = vmul.f32 %v1179, 2.0
        %v1267 = vmul.f32 %v1181, 2.0
        %v1268 = vmul.f32 %v1183, 2.0
        %v1269 = vmul.f32 %v1185, 2.0
        %v1270 = vmul.f32 %v1187, 2.0
        %v1271 = vmul.f32 %v1189, 2.0
        %v1272 = vmul.f32 %v1191, 2.0
        %v1273 = vmul.f32 %v1193, 2.0
        %v1274 = vmul.f32 %v1195, 2.0
        %v1275 = vmul.f32 %v1197, 2.0
        %v1276 = vmul.f32 %v1199, 2.0
        %v1277 = vmul.f32 %v1201, 2.0
        %v1278 = vmul.f32 %v1203, 2.0
        %v1279 = vmul.f32 %v1205, 2.0
        %v1280 = vmul.f32 %v1207, 2.0
        %v1281 = vmul.f32 %v1209, 2.0
        %v1282 = vmul.f32 %v1211, 2.0
        %v1283 = vmul.f32 %v1213, 2.0
        %v1284 = vmul.f32 %v1215, 2.0
        %v1285 = vmul.f32 %v1217, 2.0
        %v1286 = vmul.f32 %v1219, 2.0
        %v1287 = vmul.f32 %v1221, 2.0
        %v1288 = vmul.f32 %v1223, 2.0
        %v1289 = vmul.f32 %v1225, 2.0
        %v1290 = vsub.f32 %v906, %v1226
        %v1291 = vsub.f32 %v907, %v1227
        %v1292 = vsub.f32 %v908, %v1228
        %v1293 = vsub.f32 %v909, %v1229
        %v1294 = vsub.f32 %v910, %v1230
        %v1295 = vsub.f32 %v911, %v1231
        %v1296 = vsub.f32 %v912, %v1232
        %v1297 = vsub.f32 %v913, %v1233
        %v1298 = vsub.f32 %v914, %v1234
        %v1299 = vsub.f32 %v915, %v1235
        %v1300 = vsub.f32 %v916, %v1236
        %v1301 = vsub.f32 %v917, %v1237
        %v1302 = vsub.f32 %v918, %v1238
        %v1303 = vsub.f32 %v919, %v1239
        %v1304 = vsub.f32 %v920, %v1240
        %v1305 = vsub.f32 %v921, %v1241
        %v1306 = vsub.f32 %v922, %v1242
        %v1307 = vsub.f32 %v923, %v1243
        %v1308 = vsub.f32 %v924, %v1244
        %v1309 = vsub.f32 %v925, %v1245
        %v1310 = vsub.f32 %v926, %v1246
        %v1311 = vsub.f32 %v927, %v1247
        %v1312 = vsub.f32 %v928, %v1248
        %v1313 = vsub.f32 %v929, %v1249
        %v1314 = vsub.f32 %v930, %v1250
        %v1315 = vsub.f32 %v931, %v1251
        %v1316 = vsub.f32 %v932, %v1252
        %v1317 = vsub.f32 %v933, %v1253
        %v1318 = vsub.f32 %v934, %v1254
        %v1319 = vsub.f32 %v935, %v1255
        %v1320 = vsub.f32 %v936, %v1256
        %v1321 = vsub.f32 %v937, %v1257
        %v1322 = vsub.f32 %v938, %v1258
        %v1323 = vsub.f32 %v939, %v1259
        %v1324 = vsub.f32 %v940, %v1260
        %v1325 = vsub.f32 %v941, %v1261
        %v1326 = vsub.f32 %v942, %v1262
        %v1327 = vsub.f32 %v943, %v1263
        %v1328 = vsub.f32 %v944, %v1264
        %v1329 = vsub.f32 %v945, %v1265
        %v1330 = vsub.f32 %v946, %v1266
        %v1331 = vsub.f32 %v947, %v1267
        %v1332 = vsub.f32 %v948, %v1268
        %v1333 = vsub.f32 %v949, %v1269
        %v1334 = vsub.f32 %v950, %v1270
        %v1335 = vsub.f32 %v951, %v1271
        %v1336 = vsub.f32 %v952, %v1272
        %v1337 = vsub.f32 %v953, %v1273
        %v1338 = vsub.f32 %v954, %v1274
        %v1339 = vsub.f32 %v955, %v1275
        %v1340 = vsub.f32 %v956, %v1276
        %v1341 = vsub.f32 %v957, %v1277
        %v1342 = vsub.f32 %v958, %v1278
        %v1343 = vsub.f32 %v959, %v1279
        %v1344 = vsub.f32 %v960, %v1280
        %v1345 = vsub.f32 %v961, %v1281
        %v1346 = vsub.f32 %v962, %v1282
        %v1347 = vsub.f32 %v963, %v1283
        %v1348 = vsub.f32 %v964, %v1284
        %v1349 = vsub.f32 %v965, %v1285
        %v1350 = vsub.f32 %v966, %v1286
        %v1351 = vsub.f32 %v967, %v1287
        %v1352 = vsub.f32 %v968, %v1288
        %v1353 = vsub.f32 %v969, %v1289
        %v1354 = vmax.f32 %v1290, -8.0
        %v1355 = vmax.f32 %v1291, -8.0
        %v1356 = vmax.f32 %v1292, -8.0
        %v1357 = vmax.f32 %v1293, -8.0
        %v1358 = vmax.f32 %v1294, -8.0
        %v1359 = vmax.f32 %v1295, -8.0
        %v1360 = vmax.f32 %v1296, -8.0
        %v1361 = vmax.f32 %v1297, -8.0
        %v1362 = vmax.f32 %v1298, -8.0
        %v1363 = vmax.f32 %v1299, -8.0
        %v1364 = vmax.f32 %v1300, -8.0
        %v1365 = vmax.f32 %v1301, -8.0
        %v1366 = vmax.f32 %v1302, -8.0
        %v1367 = vmax.f32 %v1303, -8.0
        %v1368 = vmax.f32 %v1304, -8.0
        %v1369 = vmax.f32 %v1305, -8.0
        %v1370 = vmax.f32 %v1306, -8.0
        %v1371 = vmax.f32 %v1307, -8.0
        %v1372 = vmax.f32 %v1308, -8.0
        %v1373 = vmax.f32 %v1309, -8.0
        %v1374 = vmax.f32 %v1310, -8.0
        %v1375 = vmax.f32 %v1311, -8.0
        %v1376 = vmax.f32 %v1312, -8.0
        %v1377 = vmax.f32 %v1313, -8.0
        %v1378 = vmax.f32 %v1314, -8.0
        %v1379 = vmax.f32 %v1315, -8.0
        %v1380 = vmax.f32 %v1316, -8.0
        %v1381 = vmax.f32 %v1317, -8.0
        %v1382 = vmax.f32 %v1318, -8.0
        %v1383 = vmax.f32 %v1319, -8.0
        %v1384 = vmax.f32 %v1320, -8.0
        %v1385 = vmax.f32 %v1321, -8.0
        %v1386 = vmax.f32 %v1322, -8.0
        %v1387 = vmax.f32 %v1323, -8.0
        %v1388 = vmax.f32 %v1324, -8.0
        %v1389 = vmax.f32 %v1325, -8.0
        %v1390 = vmax.f32 %v1326, -8.0
        %v1391 = vmax.f32 %v1327, -8.0
        %v1392 = vmax.f32 %v1328, -8.0
        %v1393 = vmax.f32 %v1329, -8.0
        %v1394 = vmax.f32 %v1330, -8.0
        %v1395 = vmax.f32 %v1331, -8.0
        %v1396 = vmax.f32 %v1332, -8.0
        %v1397 = vmax.f32 %v1333, -8.0
        %v1398 = vmax.f32 %v1334, -8.0
        %v1399 = vmax.f32 %v1335, -8.0
        %v1400 = vmax.f32 %v1336, -8.0
        %v1401 = vmax.f32 %v1337, -8.0
        %v1402 = vmax.f32 %v1338, -8.0
        %v1403 = vmax.f32 %v1339, -8.0
        %v1404 = vmax.f32 %v1340, -8.0
        %v1405 = vmax.f32 %v1341, -8.0
        %v1406 = vmax.f32 %v1342, -8.0
        %v1407 = vmax.f32 %v1343, -8.0
        %v1408 = vmax.f32 %v1344, -8.0
        %v1409 = vmax.f32 %v1345, -8.0
        %v1410 = vmax.f32 %v1346, -8.0
        %v1411 = vmax.f32 %v1347, -8.0
        %v1412 = vmax.f32 %v1348, -8.0
        %v1413 = vmax.f32 %v1349, -8.0
        %v1414 = vmax.f32 %v1350, -8.0
        %v1415 = vmax.f32 %v1351, -8.0
        %v1416 = vmax.f32 %v1352, -8.0
        %v1417 = vmax.f32 %v1353, -8.0
        %v1418 = vmin.f32 %v1354, 8.0
        %v1419 = vmin.f32 %v1355, 8.0
        %v1420 = vmin.f32 %v1356, 8.0
        %v1421 = vmin.f32 %v1357, 8.0
        %v1422 = vmin.f32 %v1358, 8.0
        %v1423 = vmin.f32 %v1359, 8.0
        %v1424 = vmin.f32 %v1360, 8.0
        %v1425 = vmin.f32 %v1361, 8.0
        %v1426 = vmin.f32 %v1362, 8.0
        %v1427 = vmin.f32 %v1363, 8.0
        %v1428 = vmin.f32 %v1364, 8.0
        %v1429 = vmin.f32 %v1365, 8.0
        %v1430 = vmin.f32 %v1366, 8.0
        %v1431 = vmin.f32 %v1367, 8.0
        %v1432 = vmin.f32 %v1368, 8.0
        %v1433 = vmin.f32 %v1369, 8.0
        %v1434 = vmin.f32 %v1370, 8.0
        %v1435 = vmin.f32 %v1371, 8.0
        %v1436 = vmin.f32 %v1372, 8.0
        %v1437 = vmin.f32 %v1373, 8.0
        %v1438 = vmin.f32 %v1374, 8.0
        %v1439 = vmin.f32 %v1375, 8.0
        %v1440 = vmin.f32 %v1376, 8.0
        %v1441 = vmin.f32 %v1377, 8.0
        %v1442 = vmin.f32 %v1378, 8.0
        %v1443 = vmin.f32 %v1379, 8.0
        %v1444 = vmin.f32 %v1380, 8.0
        %v1445 = vmin.f32 %v1381, 8.0
        %v1446 = vmin.f32 %v1382, 8.0
        %v1447 = vmin.f32 %v1383, 8.0
        %v1448 = vmin.f32 %v1384, 8.0
        %v1449 = vmin.f32 %v1385, 8.0
        %v1450 = vmin.f32 %v1386, 8.0
        %v1451 = vmin.f32 %v1387, 8.0
        %v1452 = vmin.f32 %v1388, 8.0
        %v1453 = vmin.f32 %v1389, 8.0
        %v1454 = vmin.f32 %v1390, 8.0
        %v1455 = vmin.f32 %v1391, 8.0
        %v1456 = vmin.f32 %v1392, 8.0
        %v1457 = vmin.f32 %v1393, 8.0
        %v1458 = vmin.f32 %v1394, 8.0
        %v1459 = vmin.f32 %v1395, 8.0
        %v1460 = vmin.f32 %v1396, 8.0
        %v1461 = vmin.f32 %v1397, 8.0
        %v1462 = vmin.f32 %v1398, 8.0
        %v1463 = vmin.f32 %v1399, 8.0
        %v1464 = vmin.f32 %v1400, 8.0
        %v1465 = vmin.f32 %v1401, 8.0
        %v1466 = vmin.f32 %v1402, 8.0
        %v1467 = vmin.f32 %v1403, 8.0
        %v1468 = vmin.f32 %v1404, 8.0
        %v1469 = vmin.f32 %v1405, 8.0
        %v1470 = vmin.f32 %v1406, 8.0
        %v1471 = vmin.f32 %v1407, 8.0
        %v1472 = vmin.f32 %v1408, 8.0
        %v1473 = vmin.f32 %v1409, 8.0
        %v1474 = vmin.f32 %v1410, 8.0
        %v1475 = vmin.f32 %v1411, 8.0
        %v1476 = vmin.f32 %v1412, 8.0
        %v1477 = vmin.f32 %v1413, 8.0
        %v1478 = vmin.f32 %v1414, 8.0
        %v1479 = vmin.f32 %v1415, 8.0
        %v1480 = vmin.f32 %v1416, 8.0
        %v1481 = vmin.f32 %v1417, 8.0
        %vm1482 = vcmp.gt.f32.partialorder %v1418, 3.0
        %vm1483 = vcmp.gt.f32.partialorder %v1419, 3.0
        %vm1484 = vcmp.gt.f32.partialorder %v1420, 3.0
        %vm1485 = vcmp.gt.f32.partialorder %v1421, 3.0
        %vm1486 = vcmp.gt.f32.partialorder %v1422, 3.0
        %vm1487 = vcmp.gt.f32.partialorder %v1423, 3.0
        %vm1488 = vcmp.gt.f32.partialorder %v1424, 3.0
        %vm1489 = vcmp.gt.f32.partialorder %v1425, 3.0
        %vm1490 = vcmp.gt.f32.partialorder %v1426, 3.0
        %vm1491 = vcmp.gt.f32.partialorder %v1427, 3.0
        %vm1492 = vcmp.gt.f32.partialorder %v1428, 3.0
        %vm1493 = vcmp.gt.f32.partialorder %v1429, 3.0
        %vm1494 = vcmp.gt.f32.partialorder %v1430, 3.0
        %vm1495 = vcmp.gt.f32.partialorder %v1431, 3.0
        %vm1496 = vcmp.gt.f32.partialorder %v1432, 3.0
        %vm1497 = vcmp.gt.f32.partialorder %v1433, 3.0
        %vm1498 = vcmp.gt.f32.partialorder %v1434, 3.0
        %vm1499 = vcmp.gt.f32.partialorder %v1435, 3.0
        %vm1500 = vcmp.gt.f32.partialorder %v1436, 3.0
        %vm1501 = vcmp.gt.f32.partialorder %v1437, 3.0
        %vm1502 = vcmp.gt.f32.partialorder %v1438, 3.0
        %vm1503 = vcmp.gt.f32.partialorder %v1439, 3.0
        %vm1504 = vcmp.gt.f32.partialorder %v1440, 3.0
        %vm1505 = vcmp.gt.f32.partialorder %v1441, 3.0
        %vm1506 = vcmp.gt.f32.partialorder %v1442, 3.0
        %vm1507 = vcmp.gt.f32.partialorder %v1443, 3.0
        %vm1508 = vcmp.gt.f32.partialorder %v1444, 3.0
        %vm1509 = vcmp.gt.f32.partialorder %v1445, 3.0
        %vm1510 = vcmp.gt.f32.partialorder %v1446, 3.0
        %vm1511 = vcmp.gt.f32.partialorder %v1447, 3.0
        %vm1512 = vcmp.gt.f32.partialorder %v1448, 3.0
        %vm1513 = vcmp.gt.f32.partialorder %v1449, 3.0
        %vm1514 = vcmp.gt.f32.partialorder %v1450, 3.0
        %vm1515 = vcmp.gt.f32.partialorder %v1451, 3.0
        %vm1516 = vcmp.gt.f32.partialorder %v1452, 3.0
        %vm1517 = vcmp.gt.f32.partialorder %v1453, 3.0
        %vm1518 = vcmp.gt.f32.partialorder %v1454, 3.0
        %vm1519 = vcmp.gt.f32.partialorder %v1455, 3.0
        %vm1520 = vcmp.gt.f32.partialorder %v1456, 3.0
        %vm1521 = vcmp.gt.f32.partialorder %v1457, 3.0
        %vm1522 = vcmp.gt.f32.partialorder %v1458, 3.0
        %vm1523 = vcmp.gt.f32.partialorder %v1459, 3.0
        %vm1524 = vcmp.gt.f32.partialorder %v1460, 3.0
        %vm1525 = vcmp.gt.f32.partialorder %v1461, 3.0
        %vm1526 = vcmp.gt.f32.partialorder %v1462, 3.0
        %vm1527 = vcmp.gt.f32.partialorder %v1463, 3.0
        %vm1528 = vcmp.gt.f32.partialorder %v1464, 3.0
        %vm1529 = vcmp.gt.f32.partialorder %v1465, 3.0
        %vm1530 = vcmp.gt.f32.partialorder %v1466, 3.0
        %vm1531 = vcmp.gt.f32.partialorder %v1467, 3.0
        %vm1532 = vcmp.gt.f32.partialorder %v1468, 3.0
        %vm1533 = vcmp.gt.f32.partialorder %v1469, 3.0
        %vm1534 = vcmp.gt.f32.partialorder %v1470, 3.0
        %vm1535 = vcmp.gt.f32.partialorder %v1471, 3.0
        %vm1536 = vcmp.gt.f32.partialorder %v1472, 3.0
        %vm1537 = vcmp.gt.f32.partialorder %v1473, 3.0
        %vm1538 = vcmp.gt.f32.partialorder %v1474, 3.0
        %vm1539 = vcmp.gt.f32.partialorder %v1475, 3.0
        %vm1540 = vcmp.gt.f32.partialorder %v1476, 3.0
        %vm1541 = vcmp.gt.f32.partialorder %v1477, 3.0
        %vm1542 = vcmp.gt.f32.partialorder %v1478, 3.0
        %vm1543 = vcmp.gt.f32.partialorder %v1479, 3.0
        %vm1544 = vcmp.gt.f32.partialorder %v1480, 3.0
        %vm1545 = vcmp.gt.f32.partialorder %v1481, 3.0
        %v1546 = vsel %vm1482, 0.0, %v842
        %v1547 = vsel %vm1483, 0.0, %v843
        %v1548 = vsel %vm1484, 0.0, %v844
        %v1549 = vsel %vm1485, 0.0, %v845
        %v1550 = vsel %vm1486, 0.0, %v846
        %v1551 = vsel %vm1487, 0.0, %v847
        %v1552 = vsel %vm1488, 0.0, %v848
        %v1553 = vsel %vm1489, 0.0, %v849
        %v1554 = vsel %vm1490, 0.0, %v850
        %v1555 = vsel %vm1491, 0.0, %v851
        %v1556 = vsel %vm1492, 0.0, %v852
        %v1557 = vsel %vm1493, 0.0, %v853
        %v1558 = vsel %vm1494, 0.0, %v854
        %v1559 = vsel %vm1495, 0.0, %v855
        %v1560 = vsel %vm1496, 0.0, %v856
        %v1561 = vsel %vm1497, 0.0, %v857
        %v1562 = vsel %vm1498, 0.0, %v858
        %v1563 = vsel %vm1499, 0.0, %v859
        %v1564 = vsel %vm1500, 0.0, %v860
        %v1565 = vsel %vm1501, 0.0, %v861
        %v1566 = vsel %vm1502, 0.0, %v862
        %v1567 = vsel %vm1503, 0.0, %v863
        %v1568 = vsel %vm1504, 0.0, %v864
        %v1569 = vsel %vm1505, 0.0, %v865
        %v1570 = vsel %vm1506, 0.0, %v866
        %v1571 = vsel %vm1507, 0.0, %v867
        %v1572 = vsel %vm1508, 0.0, %v868
        %v1573 = vsel %vm1509, 0.0, %v869
        %v1574 = vsel %vm1510, 0.0, %v870
        %v1575 = vsel %vm1511, 0.0, %v871
        %v1576 = vsel %vm1512, 0.0, %v872
        %v1577 = vsel %vm1513, 0.0, %v873
        %v1578 = vsel %vm1514, 0.0, %v874
        %v1579 = vsel %vm1515, 0.0, %v875
        %v1580 = vsel %vm1516, 0.0, %v876
        %v1581 = vsel %vm1517, 0.0, %v877
        %v1582 = vsel %vm1518, 0.0, %v878
        %v1583 = vsel %vm1519, 0.0, %v879
        %v1584 = vsel %vm1520, 0.0, %v880
        %v1585 = vsel %vm1521, 0.0, %v881
        %v1586 = vsel %vm1522, 0.0, %v882
        %v1587 = vsel %vm1523, 0.0, %v883
        %v1588 = vsel %vm1524, 0.0, %v884
        %v1589 = vsel %vm1525, 0.0, %v885
        %v1590 = vsel %vm1526, 0.0, %v886
        %v1591 = vsel %vm1527, 0.0, %v887
        %v1592 = vsel %vm1528, 0.0, %v888
        %v1593 = vsel %vm1529, 0.0, %v889
        %v1594 = vsel %vm1530, 0.0, %v890
        %v1595 = vsel %vm1531, 0.0, %v891
        %v1596 = vsel %vm1532, 0.0, %v892
        %v1597 = vsel %vm1533, 0.0, %v893
        %v1598 = vsel %vm1534, 0.0, %v894
        %v1599 = vsel %vm1535, 0.0, %v895
        %v1600 = vsel %vm1536, 0.0, %v896
        %v1601 = vsel %vm1537, 0.0, %v897
        %v1602 = vsel %vm1538, 0.0, %v898
        %v1603 = vsel %vm1539, 0.0, %v899
        %v1604 = vsel %vm1540, 0.0, %v900
        %v1605 = vsel %vm1541, 0.0, %v901
        %v1606 = vsel %vm1542, 0.0, %v902
        %v1607 = vsel %vm1543, 0.0, %v903
        %v1608 = vsel %vm1544, 0.0, %v904
        %v1609 = vsel %vm1545, 0.0, %v905
        %v1610 = vld [vmem:[%s836] sm:$0xff]
        %v1611 = vld [vmem:[%s836 + $0x8] sm:$0xff]
        %v1612 = vld [vmem:[%s836 + $0x10] sm:$0xff]
        %v1613 = vld [vmem:[%s836 + $0x18] sm:$0xff]
        %v1614 = vld [vmem:[%s836 + $0x20] sm:$0xff]
        %v1615 = vld [vmem:[%s836 + $0x28] sm:$0xff]
        %v1616 = vld [vmem:[%s836 + $0x30] sm:$0xff]
        %v1617 = vld [vmem:[%s836 + $0x38] sm:$0xff]
        %v1618 = vld [vmem:[%s836 + $0x40] sm:$0xff]
        %v1619 = vld [vmem:[%s836 + $0x48] sm:$0xff]
        %v1620 = vld [vmem:[%s836 + $0x50] sm:$0xff]
        %v1621 = vld [vmem:[%s836 + $0x58] sm:$0xff]
        %v1622 = vld [vmem:[%s836 + $0x60] sm:$0xff]
        %v1623 = vld [vmem:[%s836 + $0x68] sm:$0xff]
        %v1624 = vld [vmem:[%s836 + $0x70] sm:$0xff]
        %v1625 = vld [vmem:[%s836 + $0x78] sm:$0xff]
        %v1626 = vld [vmem:[%s836 + $0x80] sm:$0xff]
        %v1627 = vld [vmem:[%s836 + $0x88] sm:$0xff]
        %v1628 = vld [vmem:[%s836 + $0x90] sm:$0xff]
        %v1629 = vld [vmem:[%s836 + $0x98] sm:$0xff]
        %v1630 = vld [vmem:[%s836 + $0xa0] sm:$0xff]
        %v1631 = vld [vmem:[%s836 + $0xa8] sm:$0xff]
        %v1632 = vld [vmem:[%s836 + $0xb0] sm:$0xff]
        %v1633 = vld [vmem:[%s836 + $0xb8] sm:$0xff]
        %v1634 = vld [vmem:[%s836 + $0xc0] sm:$0xff]
        %v1635 = vld [vmem:[%s836 + $0xc8] sm:$0xff]
        %v1636 = vld [vmem:[%s836 + $0xd0] sm:$0xff]
        %v1637 = vld [vmem:[%s836 + $0xd8] sm:$0xff]
        %v1638 = vld [vmem:[%s836 + $0xe0] sm:$0xff]
        %v1639 = vld [vmem:[%s836 + $0xe8] sm:$0xff]
        %v1640 = vld [vmem:[%s836 + $0xf0] sm:$0xff]
        %v1641 = vld [vmem:[%s836 + $0xf8] sm:$0xff]
        %v1642 = vld [vmem:[%s836 + $0x100] sm:$0xff]
        %v1643 = vld [vmem:[%s836 + $0x108] sm:$0xff]
        %v1644 = vld [vmem:[%s836 + $0x110] sm:$0xff]
        %v1645 = vld [vmem:[%s836 + $0x118] sm:$0xff]
        %v1646 = vld [vmem:[%s836 + $0x120] sm:$0xff]
        %v1647 = vld [vmem:[%s836 + $0x128] sm:$0xff]
        %v1648 = vld [vmem:[%s836 + $0x130] sm:$0xff]
        %v1649 = vld [vmem:[%s836 + $0x138] sm:$0xff]
        %v1650 = vld [vmem:[%s836 + $0x140] sm:$0xff]
        %v1651 = vld [vmem:[%s836 + $0x148] sm:$0xff]
        %v1652 = vld [vmem:[%s836 + $0x150] sm:$0xff]
        %v1653 = vld [vmem:[%s836 + $0x158] sm:$0xff]
        %v1654 = vld [vmem:[%s836 + $0x160] sm:$0xff]
        %v1655 = vld [vmem:[%s836 + $0x168] sm:$0xff]
        %v1656 = vld [vmem:[%s836 + $0x170] sm:$0xff]
        %v1657 = vld [vmem:[%s836 + $0x178] sm:$0xff]
        %v1658 = vld [vmem:[%s836 + $0x180] sm:$0xff]
        %v1659 = vld [vmem:[%s836 + $0x188] sm:$0xff]
        %v1660 = vld [vmem:[%s836 + $0x190] sm:$0xff]
        %v1661 = vld [vmem:[%s836 + $0x198] sm:$0xff]
        %v1662 = vld [vmem:[%s836 + $0x1a0] sm:$0xff]
        %v1663 = vld [vmem:[%s836 + $0x1a8] sm:$0xff]
        %v1664 = vld [vmem:[%s836 + $0x1b0] sm:$0xff]
        %v1665 = vld [vmem:[%s836 + $0x1b8] sm:$0xff]
        %v1666 = vld [vmem:[%s836 + $0x1c0] sm:$0xff]
        %v1667 = vld [vmem:[%s836 + $0x1c8] sm:$0xff]
        %v1668 = vld [vmem:[%s836 + $0x1d0] sm:$0xff]
        %v1669 = vld [vmem:[%s836 + $0x1d8] sm:$0xff]
        %v1670 = vld [vmem:[%s836 + $0x1e0] sm:$0xff]
        %v1671 = vld [vmem:[%s836 + $0x1e8] sm:$0xff]
        %v1672 = vld [vmem:[%s836 + $0x1f0] sm:$0xff]
        %v1673 = vld [vmem:[%s836 + $0x1f8] sm:$0xff]
        %v1674 = vld [vmem:[%s840] sm:$0x1]
        %v1676 = vlaneseq
        %v1677 = vshrl.u32 %v1676, 7
        %v1678 = vsub.s32 0, %v1677
        %v1679 = vrot.slane %v1674, %v1678
        %1681 = vmatprep.subr.mxu0 0.0
        %1682 = vmatpush1.msra.mxu0 %v1546
        %1683 = vmatprep.subr.mxu0 0.0
        %1684 = vmatpush1.msra.mxu0 %v1547
        %1685 = vmatprep.subr.mxu0 0.0
        %1686 = vmatpush1.msra.mxu0 %v1548
        %1687 = vmatprep.subr.mxu0 0.0
        %1688 = vmatpush1.msra.mxu0 %v1549
        %1689 = vmatprep.subr.mxu0 0.0
        %1690 = vmatpush1.msra.mxu0 %v1550
        %1691 = vmatprep.subr.mxu0 0.0
        %1692 = vmatpush1.msra.mxu0 %v1551
        %1693 = vmatprep.subr.mxu0 0.0
        %1694 = vmatpush1.msra.mxu0 %v1552
        %1695 = vmatprep.subr.mxu0 0.0
        %1696 = vmatpush1.msra.mxu0 %v1553
        %1697 = vmatprep.subr.mxu0 0.0
        %1698 = vmatpush1.msra.mxu0 %v1554
        %1699 = vmatprep.subr.mxu0 0.0
        %1700 = vmatpush1.msra.mxu0 %v1555
        %1701 = vmatprep.subr.mxu0 0.0
        %1702 = vmatpush1.msra.mxu0 %v1556
        %1703 = vmatprep.subr.mxu0 0.0
        %1704 = vmatpush1.msra.mxu0 %v1557
        %1705 = vmatprep.subr.mxu0 0.0
        %1706 = vmatpush1.msra.mxu0 %v1558
        %1707 = vmatprep.subr.mxu0 0.0
        %1708 = vmatpush1.msra.mxu0 %v1559
        %1709 = vmatprep.subr.mxu0 0.0
        %1710 = vmatpush1.msra.mxu0 %v1560
        %1711 = vmatprep.subr.mxu0 0.0
        %1712 = vmatpush1.msra.mxu0 %v1561
        %1713 = vmatprep.subr.mxu0 0.0
        %1714 = vmatpush1.msra.mxu0 %v1562
        %1715 = vmatprep.subr.mxu0 0.0
        %1716 = vmatpush1.msra.mxu0 %v1563
        %1717 = vmatprep.subr.mxu0 0.0
        %1718 = vmatpush1.msra.mxu0 %v1564
        %1719 = vmatprep.subr.mxu0 0.0
        %1720 = vmatpush1.msra.mxu0 %v1565
        %1721 = vmatprep.subr.mxu0 0.0
        %1722 = vmatpush1.msra.mxu0 %v1566
        %1723 = vmatprep.subr.mxu0 0.0
        %1724 = vmatpush1.msra.mxu0 %v1567
        %1725 = vmatprep.subr.mxu0 0.0
        %1726 = vmatpush1.msra.mxu0 %v1568
        %1727 = vmatprep.subr.mxu0 0.0
        %1728 = vmatpush1.msra.mxu0 %v1569
        %1729 = vmatprep.subr.mxu0 0.0
        %1730 = vmatpush1.msra.mxu0 %v1570
        %1731 = vmatprep.subr.mxu0 0.0
        %1732 = vmatpush1.msra.mxu0 %v1571
        %1733 = vmatprep.subr.mxu0 0.0
        %1734 = vmatpush1.msra.mxu0 %v1572
        %1735 = vmatprep.subr.mxu0 0.0
        %1736 = vmatpush1.msra.mxu0 %v1573
        %1737 = vmatprep.subr.mxu0 0.0
        %1738 = vmatpush1.msra.mxu0 %v1574
        %1739 = vmatprep.subr.mxu0 0.0
        %1740 = vmatpush1.msra.mxu0 %v1575
        %1741 = vmatprep.subr.mxu0 0.0
        %1742 = vmatpush1.msra.mxu0 %v1576
        %1743 = vmatprep.subr.mxu0 0.0
        %1744 = vmatpush1.msra.mxu0 %v1577
        %1745 = vmatprep.mubr.f32.mxu0 %v1611
        %1746 = vmatmul.mubr.f32.gmra.mrb[0].mxu0 %v1610
        %v1747 = vpop.f32.mrb[0].mxu0
        %v1748 = vadd.f32 %v1679, %v1747
        %v1749 = vpop.f32.mrb[0].mxu0
        %1750 = vmatprep.mubr.f32.mxu0 %v1615
        %1751 = vmatmul.mubr.f32.gmra.mrb[0].mxu0 %v1614
        %v1752 = vpop.f32.mrb[0].mxu0
        %v1753 = vadd.f32 %v1679, %v1752
        %v1754 = vpop.f32.mrb[0].mxu0
        %1755 = vmatprep.mubr.f32.mxu0 %v1619
        %1756 = vmatmul.mubr.f32.gmra.mrb[0].mxu0 %v1618
        %v1757 = vpop.f32.mrb[0].mxu0
        %v1758 = vadd.f32 %v1679, %v1757
        %v1759 = vpop.f32.mrb[0].mxu0
        %1760 = vmatprep.mubr.f32.mxu0 %v1623
        %1761 = vmatmul.mubr.f32.gmra.mrb[0].mxu0 %v1622
        %v1762 = vpop.f32.mrb[0].mxu0
        %v1763 = vadd.f32 %v1679, %v1762
        %v1764 = vpop.f32.mrb[0].mxu0
        %1765 = vmatprep.mubr.f32.mxu0 %v1627
        %1766 = vmatmul.mubr.f32.gmra.mrb[0].mxu0 %v1626
        %v1767 = vpop.f32.mrb[0].mxu0
        %v1768 = vadd.f32 %v1679, %v1767
        %v1769 = vpop.f32.mrb[0].mxu0
        %1770 = vmatprep.mubr.f32.mxu0 %v1631
        %1771 = vmatmul.mubr.f32.gmra.mrb[0].mxu0 %v1630
        %v1772 = vpop.f32.mrb[0].mxu0
        %v1773 = vadd.f32 %v1679, %v1772
        %v1774 = vpop.f32.mrb[0].mxu0
        %1775 = vmatprep.mubr.f32.mxu0 %v1635
        %1776 = vmatmul.mubr.f32.gmra.mrb[0].mxu0 %v1634
        %v1777 = vpop.f32.mrb[0].mxu0
        %v1778 = vadd.f32 %v1679, %v1777
        %v1779 = vpop.f32.mrb[0].mxu0
        %1780 = vmatprep.mubr.f32.mxu0 %v1639
        %1781 = vmatmul.mubr.f32.gmra.mrb[0].mxu0 %v1638
        %v1782 = vpop.f32.mrb[0].mxu0
        %v1783 = vadd.f32 %v1679, %v1782
        %v1784 = vpop.f32.mrb[0].mxu0
        %1785 = vmatprep.mubr.f32.mxu0 %v1643
        %1786 = vmatmul.mubr.f32.gmra.mrb[0].mxu0 %v1642
        %v1787 = vpop.f32.mrb[0].mxu0
        %v1788 = vadd.f32 %v1679, %v1787
        %v1789 = vpop.f32.mrb[0].mxu0
        %1790 = vmatprep.mubr.f32.mxu0 %v1647
        %1791 = vmatmul.mubr.f32.gmra.mrb[0].mxu0 %v1646
        %v1792 = vpop.f32.mrb[0].mxu0
        %v1793 = vadd.f32 %v1679, %v1792
        %v1794 = vpop.f32.mrb[0].mxu0
        %1795 = vmatprep.mubr.f32.mxu0 %v1651
        %1796 = vmatmul.mubr.f32.gmra.mrb[0].mxu0 %v1650
        %v1797 = vpop.f32.mrb[0].mxu0
        %v1798 = vadd.f32 %v1679, %v1797
        %v1799 = vpop.f32.mrb[0].mxu0
        %1800 = vmatprep.mubr.f32.mxu0 %v1655
        %1801 = vmatmul.mubr.f32.gmra.mrb[0].mxu0 %v1654
        %v1802 = vpop.f32.mrb[0].mxu0
        %v1803 = vadd.f32 %v1679, %v1802
        %v1804 = vpop.f32.mrb[0].mxu0
        %1805 = vmatprep.mubr.f32.mxu0 %v1659
        %1806 = vmatmul.mubr.f32.gmra.mrb[0].mxu0 %v1658
        %v1807 = vpop.f32.mrb[0].mxu0
        %v1808 = vadd.f32 %v1679, %v1807
        %v1809 = vpop.f32.mrb[0].mxu0
        %1810 = vmatprep.mubr.f32.mxu0 %v1663
        %1811 = vmatmul.mubr.f32.gmra.mrb[0].mxu0 %v1662
        %v1812 = vpop.f32.mrb[0].mxu0
        %v1813 = vadd.f32 %v1679, %v1812
        %v1814 = vpop.f32.mrb[0].mxu0
        %1815 = vmatprep.mubr.f32.mxu0 %v1667
        %1816 = vmatmul.mubr.f32.gmra.mrb[0].mxu0 %v1666
        %v1817 = vpop.f32.mrb[0].mxu0
        %v1818 = vadd.f32 %v1679, %v1817
        %v1819 = vpop.f32.mrb[0].mxu0
        %1820 = vmatprep.mubr.f32.mxu0 %v1671
        %1821 = vmatmul.mubr.f32.gmra.mrb[0].mxu0 %v1670
        %v1822 = vpop.f32.mrb[0].mxu0
        %v1823 = vadd.f32 %v1679, %v1822
        %v1824 = vpop.f32.mrb[0].mxu0
        %1825 = vdwg.mxu0
        %1826 = vmatprep.subr.mxu0 0.0
        %1827 = vmatpush1.msra.mxu0 %v1578
        %1828 = vmatprep.subr.mxu0 0.0
        %1829 = vmatpush1.msra.mxu0 %v1579
        %1830 = vmatprep.subr.mxu0 0.0
        %1831 = vmatpush1.msra.mxu0 %v1580
        %1832 = vmatprep.subr.mxu0 0.0
        %1833 = vmatpush1.msra.mxu0 %v1581
        %1834 = vmatprep.subr.mxu0 0.0
        %1835 = vmatpush1.msra.mxu0 %v1582
        %1836 = vmatprep.subr.mxu0 0.0
        %1837 = vmatpush1.msra.mxu0 %v1583
        %1838 = vmatprep.subr.mxu0 0.0
        %1839 = vmatpush1.msra.mxu0 %v1584
        %1840 = vmatprep.subr.mxu0 0.0
        %1841 = vmatpush1.msra.mxu0 %v1585
        %1842 = vmatprep.subr.mxu0 0.0
        %1843 = vmatpush1.msra.mxu0 %v1586
        %1844 = vmatprep.subr.mxu0 0.0
        %1845 = vmatpush1.msra.mxu0 %v1587
        %1846 = vmatprep.subr.mxu0 0.0
        %1847 = vmatpush1.msra.mxu0 %v1588
        %1848 = vmatprep.subr.mxu0 0.0
        %1849 = vmatpush1.msra.mxu0 %v1589
        %1850 = vmatprep.subr.mxu0 0.0
        %1851 = vmatpush1.msra.mxu0 %v1590
        %1852 = vmatprep.subr.mxu0 0.0
        %1853 = vmatpush1.msra.mxu0 %v1591
        %1854 = vmatprep.subr.mxu0 0.0
        %1855 = vmatpush1.msra.mxu0 %v1592
        %1856 = vmatprep.subr.mxu0 0.0
        %1857 = vmatpush1.msra.mxu0 %v1593
        %1858 = vmatprep.subr.mxu0 0.0
        %1859 = vmatpush1.msra.mxu0 %v1594
        %1860 = vmatprep.subr.mxu0 0.0
        %1861 = vmatpush1.msra.mxu0 %v1595
        %1862 = vmatprep.subr.mxu0 0.0
        %1863 = vmatpush1.msra.mxu0 %v1596
        %1864 = vmatprep.subr.mxu0 0.0
        %1865 = vmatpush1.msra.mxu0 %v1597
        %1866 = vmatprep.subr.mxu0 0.0
        %1867 = vmatpush1.msra.mxu0 %v1598
        %1868 = vmatprep.subr.mxu0 0.0
        %1869 = vmatpush1.msra.mxu0 %v1599
        %1870 = vmatprep.subr.mxu0 0.0
        %1871 = vmatpush1.msra.mxu0 %v1600
        %1872 = vmatprep.subr.mxu0 0.0
        %1873 = vmatpush1.msra.mxu0 %v1601
        %1874 = vmatprep.subr.mxu0 0.0
        %1875 = vmatpush1.msra.mxu0 %v1602
        %1876 = vmatprep.subr.mxu0 0.0
        %1877 = vmatpush1.msra.mxu0 %v1603
        %1878 = vmatprep.subr.mxu0 0.0
        %1879 = vmatpush1.msra.mxu0 %v1604
        %1880 = vmatprep.subr.mxu0 0.0
        %1881 = vmatpush1.msra.mxu0 %v1605
        %1882 = vmatprep.subr.mxu0 0.0
        %1883 = vmatpush1.msra.mxu0 %v1606
        %1884 = vmatprep.subr.mxu0 0.0
        %1885 = vmatpush1.msra.mxu0 %v1607
        %1886 = vmatprep.subr.mxu0 0.0
        %1887 = vmatpush1.msra.mxu0 %v1608
        %1888 = vmatprep.subr.mxu0 0.0
        %1889 = vmatpush1.msra.mxu0 %v1609
        %1890 = vmatprep.mubr.f32.mxu0 %v1613
        %1891 = vmatmul.mubr.f32.gmra.mrb[0].mxu0 %v1612
        %v1892 = vpop.f32.mrb[0].mxu0
        %v1893 = vadd.f32 %v1748, %v1892
        %v1894 = vpop.f32.mrb[0].mxu0
        %1895 = vmatprep.mubr.f32.mxu0 %v1617
        %1896 = vmatmul.mubr.f32.gmra.mrb[0].mxu0 %v1616
        %v1897 = vpop.f32.mrb[0].mxu0
        %v1898 = vadd.f32 %v1753, %v1897
        %v1899 = vpop.f32.mrb[0].mxu0
        %1900 = vmatprep.mubr.f32.mxu0 %v1621
        %1901 = vmatmul.mubr.f32.gmra.mrb[0].mxu0 %v1620
        %v1902 = vpop.f32.mrb[0].mxu0
        %v1903 = vadd.f32 %v1758, %v1902
        %v1904 = vpop.f32.mrb[0].mxu0
        %1905 = vmatprep.mubr.f32.mxu0 %v1625
        %1906 = vmatmul.mubr.f32.gmra.mrb[0].mxu0 %v1624
        %v1907 = vpop.f32.mrb[0].mxu0
        %v1908 = vadd.f32 %v1763, %v1907
        %v1909 = vpop.f32.mrb[0].mxu0
        %1910 = vmatprep.mubr.f32.mxu0 %v1629
        %1911 = vmatmul.mubr.f32.gmra.mrb[0].mxu0 %v1628
        %v1912 = vpop.f32.mrb[0].mxu0
        %v1913 = vadd.f32 %v1768, %v1912
        %v1914 = vpop.f32.mrb[0].mxu0
        %1915 = vmatprep.mubr.f32.mxu0 %v1633
        %1916 = vmatmul.mubr.f32.gmra.mrb[0].mxu0 %v1632
        %v1917 = vpop.f32.mrb[0].mxu0
        %v1918 = vadd.f32 %v1773, %v1917
        %v1919 = vpop.f32.mrb[0].mxu0
        %1920 = vmatprep.mubr.f32.mxu0 %v1637
        %1921 = vmatmul.mubr.f32.gmra.mrb[0].mxu0 %v1636
        %v1922 = vpop.f32.mrb[0].mxu0
        %v1923 = vadd.f32 %v1778, %v1922
        %v1924 = vpop.f32.mrb[0].mxu0
        %1925 = vmatprep.mubr.f32.mxu0 %v1641
        %1926 = vmatmul.mubr.f32.gmra.mrb[0].mxu0 %v1640
        %v1927 = vpop.f32.mrb[0].mxu0
        %v1928 = vadd.f32 %v1783, %v1927
        %v1929 = vpop.f32.mrb[0].mxu0
        %1930 = vmatprep.mubr.f32.mxu0 %v1645
        %1931 = vmatmul.mubr.f32.gmra.mrb[0].mxu0 %v1644
        %v1932 = vpop.f32.mrb[0].mxu0
        %v1933 = vadd.f32 %v1788, %v1932
        %v1934 = vpop.f32.mrb[0].mxu0
        %1935 = vmatprep.mubr.f32.mxu0 %v1649
        %1936 = vmatmul.mubr.f32.gmra.mrb[0].mxu0 %v1648
        %v1937 = vpop.f32.mrb[0].mxu0
        %v1938 = vadd.f32 %v1793, %v1937
        %v1939 = vpop.f32.mrb[0].mxu0
        %1940 = vmatprep.mubr.f32.mxu0 %v1653
        %1941 = vmatmul.mubr.f32.gmra.mrb[0].mxu0 %v1652
        %v1942 = vpop.f32.mrb[0].mxu0
        %v1943 = vadd.f32 %v1798, %v1942
        %v1944 = vpop.f32.mrb[0].mxu0
        %1945 = vmatprep.mubr.f32.mxu0 %v1657
        %1946 = vmatmul.mubr.f32.gmra.mrb[0].mxu0 %v1656
        %v1947 = vpop.f32.mrb[0].mxu0
        %v1948 = vadd.f32 %v1803, %v1947
        %v1949 = vpop.f32.mrb[0].mxu0
        %1950 = vmatprep.mubr.f32.mxu0 %v1661
        %1951 = vmatmul.mubr.f32.gmra.mrb[0].mxu0 %v1660
        %v1952 = vpop.f32.mrb[0].mxu0
        %v1953 = vadd.f32 %v1808, %v1952
        %v1954 = vpop.f32.mrb[0].mxu0
        %1955 = vmatprep.mubr.f32.mxu0 %v1665
        %1956 = vmatmul.mubr.f32.gmra.mrb[0].mxu0 %v1664
        %v1957 = vpop.f32.mrb[0].mxu0
        %v1958 = vadd.f32 %v1813, %v1957
        %v1959 = vpop.f32.mrb[0].mxu0
        %1960 = vmatprep.mubr.f32.mxu0 %v1669
        %1961 = vmatmul.mubr.f32.gmra.mrb[0].mxu0 %v1668
        %v1962 = vpop.f32.mrb[0].mxu0
        %v1963 = vadd.f32 %v1818, %v1962
        %v1964 = vpop.f32.mrb[0].mxu0
        %1965 = vmatprep.mubr.f32.mxu0 %v1673
        %1966 = vmatmul.mubr.f32.gmra.mrb[0].mxu0 %v1672
        %v1967 = vpop.f32.mrb[0].mxu0
        %v1968 = vadd.f32 %v1823, %v1967
        %v1969 = vpop.f32.mrb[0].mxu0
        %1970 = vdwg.mxu0
        %1971 = vst [vmem:[%s830] sm:$0xff] %v1893
        %1972 = vst [vmem:[%s830 + $0x8] sm:$0xff] %v1898
        %1973 = vst [vmem:[%s830 + $0x10] sm:$0xff] %v1903
        %1974 = vst [vmem:[%s830 + $0x18] sm:$0xff] %v1908
        %1975 = vst [vmem:[%s830 + $0x20] sm:$0xff] %v1913
        %1976 = vst [vmem:[%s830 + $0x28] sm:$0xff] %v1918
        %1977 = vst [vmem:[%s830 + $0x30] sm:$0xff] %v1923
        %1978 = vst [vmem:[%s830 + $0x38] sm:$0xff] %v1928
        %1979 = vst [vmem:[%s830 + $0x40] sm:$0xff] %v1933
        %1980 = vst [vmem:[%s830 + $0x48] sm:$0xff] %v1938
        %1981 = vst [vmem:[%s830 + $0x50] sm:$0xff] %v1943
        %1982 = vst [vmem:[%s830 + $0x58] sm:$0xff] %v1948
        %1983 = vst [vmem:[%s830 + $0x60] sm:$0xff] %v1953
        %1984 = vst [vmem:[%s830 + $0x68] sm:$0xff] %v1958
        %1985 = vst [vmem:[%s830 + $0x70] sm:$0xff] %v1963
        %1986 = vst [vmem:[%s830 + $0x78] sm:$0xff] %v1968
        %s1987 = sand.u32 %s144, 1
        %s1988 = scalar_lea.sflag [#allocation5], %s1987
        %s1989 = sand.u32 %s144, 1
        %s1990 = smul.addr %s1989, 128
        %s1991 = scalar_lea.vmem [#allocation4], %s1990
        // Predicated region
        $region113: #{_lambda_.1} parent=103 // pred_check
          %p1992 = pneg %p154
        $region114: #{_lambda_.1} parent=103 // pred_check_branch
          %1994 = sbr.rel (%p1992) target = $region116
        $region115: #{_lambda_.1} parent=103 // pred_region
          %s1995 = smul.u32 16, %s22
          %s1997 = ssub.s32 2048, 2048
          %1998 = vsyncadd %s1988, %s1997
          %s1999 = smul.addr %s1995, 2
          %s2000 = sadd.s32 %s23, %s1999
          %s2001 = smul.addr %s2000, 128
          %s2002 = scalar_lea.hbm %s4, %s2001
          %s2003 = sshll.u32 %s1991, 4
          %s2004 = int_to_ptr.vmem [resolvable:$true] %s2003
          %2009 = dma.vmem_to_hbm [thread:$0]  %s2004, 2048, %s2002, %s1988, 128, 256, 8
        $region116: #{_lambda_.1} parent=103 // pred_fallthru
          _
      $region104: #{_lambda_.1} parent=5 // pred_fallthru
        _
      %p2010 = scmp.le.s32.totalorder 2, %s13
      // Predicated region
      $region117: #{_lambda_.1} parent=5 // pred_check
        %p2011 = pneg %p2010
      $region118: #{_lambda_.1} parent=5 // pred_check_branch
        %2013 = sbr.rel (%p2011) target = $region120
      $region119: #{_lambda_.1} parent=5 // pred_region
        %s2014 = ssub.s32 %s13, 2
        // Predicated region
        $region121: #{_lambda_.1} parent=119 // pred_check
          %p2015 = pneg %p160
        $region122: #{_lambda_.1} parent=119 // pred_check_branch
          %2017 = sbr.rel (%p2015) target = $region124
        $region123: #{_lambda_.1} parent=119 // pred_region
          %s2018 = sand.u32 %s145, 1
          %s2019 = scalar_lea.sflag [#allocation5], %s2018
          %s2020 = sand.u32 %s145, 1
          %s2021 = smul.addr %s2020, 128
          %s2022 = scalar_lea.vmem [#allocation4], %s2021
          %2023 = dma.done %s2019, 2048
        $region124: #{_lambda_.1} parent=119 // pred_fallthru
          _
      $region120: #{_lambda_.1} parent=5 // pred_fallthru
        _
    $region6: #{_lambda_.1} parent=1 // loop_footer
      %s17 = sadd.s32 1, %s13
    $region7: #{_lambda_.1} parent=1 // loop_footer_branch
      %12 = sbr.rel target = $region3
    $region8: #{_lambda_.1} parent=1 // loop_exit
      _
    %2024 = vsyncpa [#allocation5], 1
    %s2025 = scalar_lea.sflag [#allocation5], 1
    %2026 = vsyncpa %s2025, 1

</llo_original>
